<compile_context>
chip_gen: v5e
topology: v5e:2x2
jax: 0.10.0
libtpu: 0.0.40
codegen_flags: <defaults>
</compile_context>

<pallas_src>
import functools

import jax
import jax.numpy as jnp
from jax.experimental import pallas as pl
from jax.experimental.pallas import tpu as pltpu


# ----------------------------------------------------------------------------
# Fused kernel: skew-interleaved 2-layer LSTM recurrence + MLP head, VMEM-only.
# ----------------------------------------------------------------------------
def _fused_lstm_mlp_kernel(x_ref,                       # (T*B, F) time-major input
                           wih1_ref, b1_ref,            # layer-1 input projection
                           wfused_ref,                  # (2H, 8H) = [[Whh1, Wih2],[0, Whh2]]
                           b2_ref,                      # (1, 4H) layer-2 bias
                           s0_ref, t0_ref, w1_ref, bm1_ref,
                           s1_ref, t1_ref, w2_ref, bm2_ref,
                           s2_ref, t2_ref, w3_ref, bm3_ref,
                           o_ref,                       # (B, out_len)
                           *, B, T, H):
    G = 4 * H

    # Per-lane activation constants (computed once, outside the serial loop):
    # sigmoid(x) = 0.5*(tanh(x/2)+1) on the [i,f,o] columns, plain tanh on [g]
    # -> a single full-width EUP tanh per gate vector.
    lane = jax.lax.broadcasted_iota(jnp.int32, (1, G), 1)
    is_sig = lane < 3 * H
    pre_scale = jnp.where(is_sig, 0.5, 1.0)
    post_mul = jnp.where(is_sig, 0.5, 1.0)
    post_add = jnp.where(is_sig, 0.5, 0.0)

    def cell_update(gates, c_prev):
        act = jnp.tanh(gates * pre_scale) * post_mul + post_add   # [i|f|o|g]
        i = act[:, :H]
        f = act[:, H:2 * H]
        o = act[:, 2 * H:3 * H]
        g = act[:, 3 * H:]
        c = f * c_prev + i * g
        h = o * jnp.tanh(c)
        return h, c

    # Layer-1 input projection hoisted out of the recurrence: one time-batched
    # matmul; per-step reads below are contiguous row blocks (time-major).
    xp1 = (jnp.dot(x_ref[...], wih1_ref[...], preferred_element_type=jnp.float32)
           + b1_ref[...]).reshape(T, B, G)
    b2 = b2_ref[...]
    wf = wfused_ref[...]
    # TODO(synk): optionally hold `wf` in MXU weight registers across steps via
    # pltpu.matmul_push_rhs / matmul_acc_lhs / matmul_pop once shapes grow.

    zero = jnp.zeros((B, H), jnp.float32)
    h1, c1 = zero, zero          # h1_{s-1}, c1_{s-1}
    h2, c2 = zero, zero          # h2_{s-2}, c2_{s-2}

    # Skewed recurrence, statically unrolled (T small, fully serial).
    # Iteration s: LSTM-1 step s (s < T) and LSTM-2 step s-1 (s >= 1) computed
    # off ONE fused matmul on [h1_{s-1} | h2_{s-2}].
    for s in range(T + 1):
        if s == 0:
            h1, c1 = cell_update(xp1[0], c1)          # h1_prev = 0 -> no matmul
            continue
        r = jnp.dot(jnp.concatenate([h1, h2], axis=-1), wf,
                    preferred_element_type=jnp.float32)          # (B, 8H)
        gates2 = r[:, G:] + b2                        # layer-2 pre-gates (step s-1)
        if s < T:
            h1, c1 = cell_update(xp1[s] + r[:, :G], c1)           # layer-1 step s
        h2, c2 = cell_update(gates2, c2)                          # layer-2 step s-1
    # h2 == top-layer hidden at the last time step (== out[:, -1, :]).

    # MLP head (eval-mode BatchNorm folded to scale/shift; Dropout = identity).
    z = jnp.maximum(h2 * s0_ref[...] + t0_ref[...], 0.0)
    z = jnp.dot(z, w1_ref[...], preferred_element_type=jnp.float32) + bm1_ref[...]
    z = jnp.maximum(z * s1_ref[...] + t1_ref[...], 0.0)
    z = jnp.dot(z, w2_ref[...], preferred_element_type=jnp.float32) + bm2_ref[...]
    z = jnp.maximum(z * s2_ref[...] + t2_ref[...], 0.0)
    z = jnp.dot(z, w3_ref[...], preferred_element_type=jnp.float32) + bm3_ref[...]
    o_ref[...] = 0.5 * (jnp.tanh(0.5 * z) + 1.0)      # sigmoid via one EUP tanh


# ----------------------------------------------------------------------------
# Wrapper: single gridless pallas_call, everything resident in VMEM.
# ----------------------------------------------------------------------------
@jax.jit
def lstm_model_forward(inp, params):
    """inp: (B, T, seq_in), batch_first like the PyTorch module. Returns (B, out_len)."""
    B, T, F = inp.shape
    (wih1, whh1, b1), (wih2, whh2, b2) = params["lstm"]   # specialized: 2 layers
    m = params["mlp"]
    H = whh1.shape[0]
    out_len = m["w3"].shape[1]

    # Time-major input so per-step slices inside the kernel are contiguous.
    x_tm = inp.astype(jnp.float32).transpose(1, 0, 2).reshape(T * B, F)

    # Fused recurrent weight, built once outside the kernel:
    #   [[W_hh1, W_ih2], [0, W_hh2]]  ->  one (B,2H)@(2H,8H) MXU pass per step.
    w_fused = jnp.concatenate(
        [jnp.concatenate([whh1, wih2], axis=1),
         jnp.concatenate([jnp.zeros_like(whh2), whh2], axis=1)], axis=0)

    args = (x_tm,
            wih1, b1, w_fused, b2,
            m["s0"], m["t0"], m["w1"], m["b1"],
            m["s1"], m["t1"], m["w2"], m["b2"],
            m["s2"], m["t2"], m["w3"], m["b3"])
    vmem = pl.BlockSpec(memory_space=pltpu.MemorySpace.VMEM)
    kernel = functools.partial(_fused_lstm_mlp_kernel, B=B, T=T, H=H)
    return pl.pallas_call(
        kernel,
        out_shape=jax.ShapeDtypeStruct((B, out_len), jnp.float32),
        in_specs=[vmem] * len(args),
        out_specs=vmem,
    )(*args)


# ----------------------------------------------------------------------------
# Helpers: PyTorch checkpoint conversion + BatchNorm folding.
# ----------------------------------------------------------------------------
def convert_torch_lstm_layer(w_ih, w_hh, b_ih, b_hh, hidden):
    """Convert one PyTorch nn.LSTM layer ((4H,in),(4H,H),(4H,),(4H,); gate row
    order [i,f,g,o]) to this kernel's layout: transposed (in,4H)/(H,4H), gate
    COLUMN order [i,f,o,g], biases pre-summed into one (1,4H) row."""
    H = hidden
    perm = jnp.concatenate([jnp.arange(0, 2 * H),        # i, f
                            jnp.arange(3 * H, 4 * H),    # o
                            jnp.arange(2 * H, 3 * H)])   # g
    w_ih_k = jnp.asarray(w_ih, jnp.float32).T[:, perm]
    w_hh_k = jnp.asarray(w_hh, jnp.float32).T[:, perm]
    b_k = (jnp.asarray(b_ih, jnp.float32) + jnp.asarray(b_hh, jnp.float32))[perm][None, :]
    return w_ih_k, w_hh_k, b_k


def fold_batchnorm(gamma, beta, running_mean, running_var, eps=1e-5):
    """Eval-mode BatchNorm1d -> per-channel (scale, shift), shapes (1, C)."""
    scale = gamma / jnp.sqrt(running_var + eps)
    shift = beta - running_mean * scale
    return scale.reshape(1, -1), shift.reshape(1, -1)


# ----------------------------------------------------------------------------
# Deterministic parameter construction (gate columns already in [i, f, o, g]).
# ----------------------------------------------------------------------------
def init_params(key, seq_in, hidden, layers, out_len):
    d1 = int(hidden // 1.5)
    d2 = int(hidden // 3)
    params = {"lstm": []}
    scale = 1.0 / jnp.sqrt(jnp.float32(hidden))

    for layer in range(layers):
        f_in = seq_in if layer == 0 else hidden
        key, k1, k2, k3, k4 = jax.random.split(key, 5)
        w_ih = jax.random.uniform(k1, (f_in, 4 * hidden), jnp.float32, -scale, scale)
        w_hh = jax.random.uniform(k2, (hidden, 4 * hidden), jnp.float32, -scale, scale)
        b_ih = jax.random.uniform(k3, (1, 4 * hidden), jnp.float32, -scale, scale)
        b_hh = jax.random.uniform(k4, (1, 4 * hidden), jnp.float32, -scale, scale)
        params["lstm"].append((w_ih, w_hh, b_ih + b_hh))

    mlp = {}
    for name, dim in (("0", hidden), ("1", d1), ("2", d2)):
        key, kg, kb = jax.random.split(key, 3)
        gamma = jax.random.uniform(kg, (dim,), jnp.float32, 0.5, 1.5)
        beta = jax.random.uniform(kb, (dim,), jnp.float32, -0.5, 0.5)
        s, t = fold_batchnorm(gamma, beta, jnp.zeros((dim,)), jnp.ones((dim,)))
        mlp["s" + name], mlp["t" + name] = s, t
    for name, (fi, fo) in (("1", (hidden, d1)), ("2", (d1, d2)), ("3", (d2, out_len))):
        key, kw, kb = jax.random.split(key, 3)
        bound = 1.0 / jnp.sqrt(jnp.float32(fi))
        mlp["w" + name] = jax.random.uniform(kw, (fi, fo), jnp.float32, -bound, bound)
        mlp["b" + name] = jax.random.uniform(kb, (1, fo), jnp.float32, -bound, bound)
    params["mlp"] = mlp
    return params


# ----------------------------------------------------------------------------
# Pure-JAX reference (same params / gate layout) for a correctness check.
# ----------------------------------------------------------------------------
def _reference_forward(inp, params):
    (wih1, whh1, b1), (wih2, whh2, b2) = params["lstm"]
    m = params["mlp"]
    B, T, _ = inp.shape
    H = whh1.shape[0]
    x = inp.astype(jnp.float32)

    def lstm_layer(x_seq, wih, whh, b):
        h = jnp.zeros((B, H), jnp.float32)
        c = jnp.zeros((B, H), jnp.float32)
        outs = []
        for t in range(T):
            gates = (jnp.dot(x_seq[:, t, :], wih, precision="highest") + b
                     + jnp.dot(h, whh, precision="highest"))
            i = jax.nn.sigmoid(gates[:, :H])
            f = jax.nn.sigmoid(gates[:, H:2 * H])
            o = jax.nn.sigmoid(gates[:, 2 * H:3 * H])
            g = jnp.tanh(gates[:, 3 * H:])
            c = f * c + i * g
            h = o * jnp.tanh(c)
            outs.append(h)
        return jnp.stack(outs, axis=1)

    h1_seq = lstm_layer(x, wih1, whh1, b1)
    h2_seq = lstm_layer(h1_seq, wih2, whh2, b2)
    z = h2_seq[:, -1, :]
    z = jnp.maximum(z * m["s0"] + m["t0"], 0.0)
    z = jnp.dot(z, m["w1"], precision="highest") + m["b1"]
    z = jnp.maximum(z * m["s1"] + m["t1"], 0.0)
    z = jnp.dot(z, m["w2"], precision="highest") + m["b2"]
    z = jnp.maximum(z * m["s2"] + m["t2"], 0.0)
    z = jnp.dot(z, m["w3"], precision="highest") + m["b3"]
    return jax.nn.sigmoid(z)


if __name__ == "__main__":
    # model_cfg: seq_in=16 (per-step feature dim), features=32, layers=2, out_len=4
    B, T, SEQ_IN, HIDDEN, LAYERS, OUT_LEN = 2, 8, 16, 32, 2, 4

    key = jax.random.PRNGKey(0)
    key, kp, kx = jax.random.split(key, 3)
    params = init_params(kp, SEQ_IN, HIDDEN, LAYERS, OUT_LEN)
    inp = jax.random.normal(kx, (B, T, SEQ_IN), jnp.float32)

    out = jax.block_until_ready(lstm_model_forward(inp, params))
    assert out.shape == (B, OUT_LEN)
    assert bool(jnp.all((out >= 0.0) & (out <= 1.0)))

    ref = jax.block_until_ready(_reference_forward(inp, params))
    assert bool(jnp.allclose(out, ref, atol=2e-3, rtol=2e-3)), (out, ref)

    print("KERNEL_OK")
</pallas_src>

<mosaic_0001>
module attributes {stable_mosaic.version = 11 : i64} {
  func.func @_fused_lstm_mlp_kernel(%arg0: memref<16x16xf32, #tpu.memory_space<vmem>>, %arg1: memref<16x128xf32, #tpu.memory_space<vmem>>, %arg2: memref<1x128xf32, #tpu.memory_space<vmem>>, %arg3: memref<64x256xf32, #tpu.memory_space<vmem>>, %arg4: memref<1x128xf32, #tpu.memory_space<vmem>>, %arg5: memref<1x32xf32, #tpu.memory_space<vmem>>, %arg6: memref<1x32xf32, #tpu.memory_space<vmem>>, %arg7: memref<32x21xf32, #tpu.memory_space<vmem>>, %arg8: memref<1x21xf32, #tpu.memory_space<vmem>>, %arg9: memref<1x21xf32, #tpu.memory_space<vmem>>, %arg10: memref<1x21xf32, #tpu.memory_space<vmem>>, %arg11: memref<21x10xf32, #tpu.memory_space<vmem>>, %arg12: memref<1x10xf32, #tpu.memory_space<vmem>>, %arg13: memref<1x10xf32, #tpu.memory_space<vmem>>, %arg14: memref<1x10xf32, #tpu.memory_space<vmem>>, %arg15: memref<10x4xf32, #tpu.memory_space<vmem>>, %arg16: memref<1x4xf32, #tpu.memory_space<vmem>>, %arg17: memref<2x4xf32, #tpu.memory_space<vmem>>) attributes {dimension_semantics = [], scalar_prefetch = 0 : i64, scratch_operands = 0 : i64, tpu.core_type = #tpu.core_type<tc>} {
    %0 = tpu.iota {dimensions = array<i32: 1>} : vector<1x128xi32>
    %c96_i32 = arith.constant 96 : i32
    %1 = vector.broadcast %c96_i32 : i32 to vector<1x128xi32>
    %2 = arith.cmpi slt, %0, %1 : vector<1x128xi32>
    %cst = arith.constant 5.000000e-01 : f32
    %cst_0 = arith.constant 1.000000e+00 : f32
    %3 = vector.broadcast %cst : f32 to vector<1x128xf32>
    %4 = vector.broadcast %cst_0 : f32 to vector<1x128xf32>
    %5 = arith.select %2, %3, %4 : vector<1x128xi1>, vector<1x128xf32>
    %cst_1 = arith.constant 5.000000e-01 : f32
    %cst_2 = arith.constant 1.000000e+00 : f32
    %6 = vector.broadcast %cst_1 : f32 to vector<1x128xf32>
    %7 = vector.broadcast %cst_2 : f32 to vector<1x128xf32>
    %8 = arith.select %2, %6, %7 : vector<1x128xi1>, vector<1x128xf32>
    %cst_3 = arith.constant 5.000000e-01 : f32
    %cst_4 = arith.constant 0.000000e+00 : f32
    %9 = vector.broadcast %cst_3 : f32 to vector<1x128xf32>
    %10 = vector.broadcast %cst_4 : f32 to vector<1x128xf32>
    %11 = arith.select %2, %9, %10 : vector<1x128xi1>, vector<1x128xf32>
    %c0 = arith.constant 0 : index
    %c0_5 = arith.constant 0 : index
    %12 = vector.load %arg0[%c0, %c0_5] : memref<16x16xf32, #tpu.memory_space<vmem>>, vector<16x16xf32>
    %c0_6 = arith.constant 0 : index
    %c0_7 = arith.constant 0 : index
    %13 = vector.load %arg1[%c0_6, %c0_7] : memref<16x128xf32, #tpu.memory_space<vmem>>, vector<16x128xf32>
    %cst_8 = arith.constant dense<0.000000e+00> : vector<16x128xf32>
    %14 = tpu.matmul %12, %13, %cst_8 {dimension_numbers = #tpu.dot_dimension_numbers<[1], [0], [0], [1], [0, 0, 1, 1], [], []>} : vector<16x16xf32>, vector<16x128xf32>, vector<16x128xf32> -> vector<16x128xf32>
    %c0_9 = arith.constant 0 : index
    %c0_10 = arith.constant 0 : index
    %15 = vector.load %arg2[%c0_9, %c0_10] : memref<1x128xf32, #tpu.memory_space<vmem>>, vector<1x128xf32>
    %16 = vector.broadcast %15 : vector<1x128xf32> to vector<16x128xf32>
    %17 = arith.addf %14, %16 : vector<16x128xf32>
    %18 = vector.shape_cast %17 : vector<16x128xf32> to vector<8x2x128xf32>
    %c0_11 = arith.constant 0 : index
    %c0_12 = arith.constant 0 : index
    %19 = vector.load %arg4[%c0_11, %c0_12] : memref<1x128xf32, #tpu.memory_space<vmem>>, vector<1x128xf32>
    %c0_13 = arith.constant 0 : index
    %c0_14 = arith.constant 0 : index
    %20 = vector.load %arg3[%c0_13, %c0_14] : memref<64x256xf32, #tpu.memory_space<vmem>>, vector<64x256xf32>
    %cst_15 = arith.constant 0.000000e+00 : f32
    %21 = vector.broadcast %cst_15 : f32 to vector<2x32xf32>
    %22 = vector.extract_strided_slice %18 {offsets = [0, 0, 0], sizes = [1, 2, 128], strides = [1, 1, 1]} : vector<8x2x128xf32> to vector<1x2x128xf32>
    %23 = vector.shape_cast %22 : vector<1x2x128xf32> to vector<2x128xf32>
    %24 = vector.broadcast %5 : vector<1x128xf32> to vector<2x128xf32>
    %25 = arith.mulf %23, %24 : vector<2x128xf32>
    %26 = math.tanh %25 : vector<2x128xf32>
    %27 = vector.broadcast %8 : vector<1x128xf32> to vector<2x128xf32>
    %28 = arith.mulf %26, %27 : vector<2x128xf32>
    %29 = vector.broadcast %11 : vector<1x128xf32> to vector<2x128xf32>
    %30 = arith.addf %28, %29 : vector<2x128xf32>
    %31 = vector.extract_strided_slice %30 {offsets = [0, 0], sizes = [2, 32], strides = [1, 1]} : vector<2x128xf32> to vector<2x32xf32>
    %32 = vector.extract_strided_slice %30 {offsets = [0, 32], sizes = [2, 32], strides = [1, 1]} : vector<2x128xf32> to vector<2x32xf32>
    %33 = vector.extract_strided_slice %30 {offsets = [0, 64], sizes = [2, 32], strides = [1, 1]} : vector<2x128xf32> to vector<2x32xf32>
    %34 = vector.extract_strided_slice %30 {offsets = [0, 96], sizes = [2, 32], strides = [1, 1]} : vector<2x128xf32> to vector<2x32xf32>
    %35 = arith.mulf %32, %21 : vector<2x32xf32>
    %36 = arith.mulf %31, %34 : vector<2x32xf32>
    %37 = arith.addf %35, %36 : vector<2x32xf32>
    %38 = math.tanh %37 : vector<2x32xf32>
    %39 = arith.mulf %33, %38 : vector<2x32xf32>
    %40 = tpu.concatenate %39, %21 in 1 : vector<2x32xf32>, vector<2x32xf32> -> vector<2x64xf32>
    %cst_16 = arith.constant dense<0.000000e+00> : vector<2x256xf32>
    %41 = tpu.matmul %40, %20, %cst_16 {dimension_numbers = #tpu.dot_dimension_numbers<[1], [0], [0], [1], [0, 0, 1, 1], [], []>} : vector<2x64xf32>, vector<64x256xf32>, vector<2x256xf32> -> vector<2x256xf32>
    %42 = vector.extract_strided_slice %41 {offsets = [0, 128], sizes = [2, 128], strides = [1, 1]} : vector<2x256xf32> to vector<2x128xf32>
    %43 = vector.broadcast %19 : vector<1x128xf32> to vector<2x128xf32>
    %44 = arith.addf %42, %43 : vector<2x128xf32>
    %45 = vector.extract_strided_slice %18 {offsets = [1, 0, 0], sizes = [1, 2, 128], strides = [1, 1, 1]} : vector<8x2x128xf32> to vector<1x2x128xf32>
    %46 = vector.shape_cast %45 : vector<1x2x128xf32> to vector<2x128xf32>
    %47 = vector.extract_strided_slice %41 {offsets = [0, 0], sizes = [2, 128], strides = [1, 1]} : vector<2x256xf32> to vector<2x128xf32>
    %48 = arith.addf %46, %47 : vector<2x128xf32>
    %49 = vector.broadcast %5 : vector<1x128xf32> to vector<2x128xf32>
    %50 = arith.mulf %48, %49 : vector<2x128xf32>
    %51 = math.tanh %50 : vector<2x128xf32>
    %52 = vector.broadcast %8 : vector<1x128xf32> to vector<2x128xf32>
    %53 = arith.mulf %51, %52 : vector<2x128xf32>
    %54 = vector.broadcast %11 : vector<1x128xf32> to vector<2x128xf32>
    %55 = arith.addf %53, %54 : vector<2x128xf32>
    %56 = vector.extract_strided_slice %55 {offsets = [0, 0], sizes = [2, 32], strides = [1, 1]} : vector<2x128xf32> to vector<2x32xf32>
    %57 = vector.extract_strided_slice %55 {offsets = [0, 32], sizes = [2, 32], strides = [1, 1]} : vector<2x128xf32> to vector<2x32xf32>
    %58 = vector.extract_strided_slice %55 {offsets = [0, 64], sizes = [2, 32], strides = [1, 1]} : vector<2x128xf32> to vector<2x32xf32>
    %59 = vector.extract_strided_slice %55 {offsets = [0, 96], sizes = [2, 32], strides = [1, 1]} : vector<2x128xf32> to vector<2x32xf32>
    %60 = arith.mulf %57, %37 : vector<2x32xf32>
    %61 = arith.mulf %56, %59 : vector<2x32xf32>
    %62 = arith.addf %60, %61 : vector<2x32xf32>
    %63 = math.tanh %62 : vector<2x32xf32>
    %64 = arith.mulf %58, %63 : vector<2x32xf32>
    %65 = vector.broadcast %5 : vector<1x128xf32> to vector<2x128xf32>
    %66 = arith.mulf %44, %65 : vector<2x128xf32>
    %67 = math.tanh %66 : vector<2x128xf32>
    %68 = vector.broadcast %8 : vector<1x128xf32> to vector<2x128xf32>
    %69 = arith.mulf %67, %68 : vector<2x128xf32>
    %70 = vector.broadcast %11 : vector<1x128xf32> to vector<2x128xf32>
    %71 = arith.addf %69, %70 : vector<2x128xf32>
    %72 = vector.extract_strided_slice %71 {offsets = [0, 0], sizes = [2, 32], strides = [1, 1]} : vector<2x128xf32> to vector<2x32xf32>
    %73 = vector.extract_strided_slice %71 {offsets = [0, 32], sizes = [2, 32], strides = [1, 1]} : vector<2x128xf32> to vector<2x32xf32>
    %74 = vector.extract_strided_slice %71 {offsets = [0, 64], sizes = [2, 32], strides = [1, 1]} : vector<2x128xf32> to vector<2x32xf32>
    %75 = vector.extract_strided_slice %71 {offsets = [0, 96], sizes = [2, 32], strides = [1, 1]} : vector<2x128xf32> to vector<2x32xf32>
    %76 = arith.mulf %73, %21 : vector<2x32xf32>
    %77 = arith.mulf %72, %75 : vector<2x32xf32>
    %78 = arith.addf %76, %77 : vector<2x32xf32>
    %79 = math.tanh %78 : vector<2x32xf32>
    %80 = arith.mulf %74, %79 : vector<2x32xf32>
    %81 = tpu.concatenate %64, %80 in 1 : vector<2x32xf32>, vector<2x32xf32> -> vector<2x64xf32>
    %cst_17 = arith.constant dense<0.000000e+00> : vector<2x256xf32>
    %82 = tpu.matmul %81, %20, %cst_17 {dimension_numbers = #tpu.dot_dimension_numbers<[1], [0], [0], [1], [0, 0, 1, 1], [], []>} : vector<2x64xf32>, vector<64x256xf32>, vector<2x256xf32> -> vector<2x256xf32>
    %83 = vector.extract_strided_slice %82 {offsets = [0, 128], sizes = [2, 128], strides = [1, 1]} : vector<2x256xf32> to vector<2x128xf32>
    %84 = vector.broadcast %19 : vector<1x128xf32> to vector<2x128xf32>
    %85 = arith.addf %83, %84 : vector<2x128xf32>
    %86 = vector.extract_strided_slice %18 {offsets = [2, 0, 0], sizes = [1, 2, 128], strides = [1, 1, 1]} : vector<8x2x128xf32> to vector<1x2x128xf32>
    %87 = vector.shape_cast %86 : vector<1x2x128xf32> to vector<2x128xf32>
    %88 = vector.extract_strided_slice %82 {offsets = [0, 0], sizes = [2, 128], strides = [1, 1]} : vector<2x256xf32> to vector<2x128xf32>
    %89 = arith.addf %87, %88 : vector<2x128xf32>
    %90 = vector.broadcast %5 : vector<1x128xf32> to vector<2x128xf32>
    %91 = arith.mulf %89, %90 : vector<2x128xf32>
    %92 = math.tanh %91 : vector<2x128xf32>
    %93 = vector.broadcast %8 : vector<1x128xf32> to vector<2x128xf32>
    %94 = arith.mulf %92, %93 : vector<2x128xf32>
    %95 = vector.broadcast %11 : vector<1x128xf32> to vector<2x128xf32>
    %96 = arith.addf %94, %95 : vector<2x128xf32>
    %97 = vector.extract_strided_slice %96 {offsets = [0, 0], sizes = [2, 32], strides = [1, 1]} : vector<2x128xf32> to vector<2x32xf32>
    %98 = vector.extract_strided_slice %96 {offsets = [0, 32], sizes = [2, 32], strides = [1, 1]} : vector<2x128xf32> to vector<2x32xf32>
    %99 = vector.extract_strided_slice %96 {offsets = [0, 64], sizes = [2, 32], strides = [1, 1]} : vector<2x128xf32> to vector<2x32xf32>
    %100 = vector.extract_strided_slice %96 {offsets = [0, 96], sizes = [2, 32], strides = [1, 1]} : vector<2x128xf32> to vector<2x32xf32>
    %101 = arith.mulf %98, %62 : vector<2x32xf32>
    %102 = arith.mulf %97, %100 : vector<2x32xf32>
    %103 = arith.addf %101, %102 : vector<2x32xf32>
    %104 = math.tanh %103 : vector<2x32xf32>
    %105 = arith.mulf %99, %104 : vector<2x32xf32>
    %106 = vector.broadcast %5 : vector<1x128xf32> to vector<2x128xf32>
    %107 = arith.mulf %85, %106 : vector<2x128xf32>
    %108 = math.tanh %107 : vector<2x128xf32>
    %109 = vector.broadcast %8 : vector<1x128xf32> to vector<2x128xf32>
    %110 = arith.mulf %108, %109 : vector<2x128xf32>
    %111 = vector.broadcast %11 : vector<1x128xf32> to vector<2x128xf32>
    %112 = arith.addf %110, %111 : vector<2x128xf32>
    %113 = vector.extract_strided_slice %112 {offsets = [0, 0], sizes = [2, 32], strides = [1, 1]} : vector<2x128xf32> to vector<2x32xf32>
    %114 = vector.extract_strided_slice %112 {offsets = [0, 32], sizes = [2, 32], strides = [1, 1]} : vector<2x128xf32> to vector<2x32xf32>
    %115 = vector.extract_strided_slice %112 {offsets = [0, 64], sizes = [2, 32], strides = [1, 1]} : vector<2x128xf32> to vector<2x32xf32>
    %116 = vector.extract_strided_slice %112 {offsets = [0, 96], sizes = [2, 32], strides = [1, 1]} : vector<2x128xf32> to vector<2x32xf32>
    %117 = arith.mulf %114, %78 : vector<2x32xf32>
    %118 = arith.mulf %113, %116 : vector<2x32xf32>
    %119 = arith.addf %117, %118 : vector<2x32xf32>
    %120 = math.tanh %119 : vector<2x32xf32>
    %121 = arith.mulf %115, %120 : vector<2x32xf32>
    %122 = tpu.concatenate %105, %121 in 1 : vector<2x32xf32>, vector<2x32xf32> -> vector<2x64xf32>
    %cst_18 = arith.constant dense<0.000000e+00> : vector<2x256xf32>
    %123 = tpu.matmul %122, %20, %cst_18 {dimension_numbers = #tpu.dot_dimension_numbers<[1], [0], [0], [1], [0, 0, 1, 1], [], []>} : vector<2x64xf32>, vector<64x256xf32>, vector<2x256xf32> -> vector<2x256xf32>
    %124 = vector.extract_strided_slice %123 {offsets = [0, 128], sizes = [2, 128], strides = [1, 1]} : vector<2x256xf32> to vector<2x128xf32>
    %125 = vector.broadcast %19 : vector<1x128xf32> to vector<2x128xf32>
    %126 = arith.addf %124, %125 : vector<2x128xf32>
    %127 = vector.extract_strided_slice %18 {offsets = [3, 0, 0], sizes = [1, 2, 128], strides = [1, 1, 1]} : vector<8x2x128xf32> to vector<1x2x128xf32>
    %128 = vector.shape_cast %127 : vector<1x2x128xf32> to vector<2x128xf32>
    %129 = vector.extract_strided_slice %123 {offsets = [0, 0], sizes = [2, 128], strides = [1, 1]} : vector<2x256xf32> to vector<2x128xf32>
    %130 = arith.addf %128, %129 : vector<2x128xf32>
    %131 = vector.broadcast %5 : vector<1x128xf32> to vector<2x128xf32>
    %132 = arith.mulf %130, %131 : vector<2x128xf32>
    %133 = math.tanh %132 : vector<2x128xf32>
    %134 = vector.broadcast %8 : vector<1x128xf32> to vector<2x128xf32>
    %135 = arith.mulf %133, %134 : vector<2x128xf32>
    %136 = vector.broadcast %11 : vector<1x128xf32> to vector<2x128xf32>
    %137 = arith.addf %135, %136 : vector<2x128xf32>
    %138 = vector.extract_strided_slice %137 {offsets = [0, 0], sizes = [2, 32], strides = [1, 1]} : vector<2x128xf32> to vector<2x32xf32>
    %139 = vector.extract_strided_slice %137 {offsets = [0, 32], sizes = [2, 32], strides = [1, 1]} : vector<2x128xf32> to vector<2x32xf32>
    %140 = vector.extract_strided_slice %137 {offsets = [0, 64], sizes = [2, 32], strides = [1, 1]} : vector<2x128xf32> to vector<2x32xf32>
    %141 = vector.extract_strided_slice %137 {offsets = [0, 96], sizes = [2, 32], strides = [1, 1]} : vector<2x128xf32> to vector<2x32xf32>
    %142 = arith.mulf %139, %103 : vector<2x32xf32>
    %143 = arith.mulf %138, %141 : vector<2x32xf32>
    %144 = arith.addf %142, %143 : vector<2x32xf32>
    %145 = math.tanh %144 : vector<2x32xf32>
    %146 = arith.mulf %140, %145 : vector<2x32xf32>
    %147 = vector.broadcast %5 : vector<1x128xf32> to vector<2x128xf32>
    %148 = arith.mulf %126, %147 : vector<2x128xf32>
    %149 = math.tanh %148 : vector<2x128xf32>
    %150 = vector.broadcast %8 : vector<1x128xf32> to vector<2x128xf32>
    %151 = arith.mulf %149, %150 : vector<2x128xf32>
    %152 = vector.broadcast %11 : vector<1x128xf32> to vector<2x128xf32>
    %153 = arith.addf %151, %152 : vector<2x128xf32>
    %154 = vector.extract_strided_slice %153 {offsets = [0, 0], sizes = [2, 32], strides = [1, 1]} : vector<2x128xf32> to vector<2x32xf32>
    %155 = vector.extract_strided_slice %153 {offsets = [0, 32], sizes = [2, 32], strides = [1, 1]} : vector<2x128xf32> to vector<2x32xf32>
    %156 = vector.extract_strided_slice %153 {offsets = [0, 64], sizes = [2, 32], strides = [1, 1]} : vector<2x128xf32> to vector<2x32xf32>
    %157 = vector.extract_strided_slice %153 {offsets = [0, 96], sizes = [2, 32], strides = [1, 1]} : vector<2x128xf32> to vector<2x32xf32>
    %158 = arith.mulf %155, %119 : vector<2x32xf32>
    %159 = arith.mulf %154, %157 : vector<2x32xf32>
    %160 = arith.addf %158, %159 : vector<2x32xf32>
    %161 = math.tanh %160 : vector<2x32xf32>
    %162 = arith.mulf %156, %161 : vector<2x32xf32>
    %163 = tpu.concatenate %146, %162 in 1 : vector<2x32xf32>, vector<2x32xf32> -> vector<2x64xf32>
    %cst_19 = arith.constant dense<0.000000e+00> : vector<2x256xf32>
    %164 = tpu.matmul %163, %20, %cst_19 {dimension_numbers = #tpu.dot_dimension_numbers<[1], [0], [0], [1], [0, 0, 1, 1], [], []>} : vector<2x64xf32>, vector<64x256xf32>, vector<2x256xf32> -> vector<2x256xf32>
    %165 = vector.extract_strided_slice %164 {offsets = [0, 128], sizes = [2, 128], strides = [1, 1]} : vector<2x256xf32> to vector<2x128xf32>
    %166 = vector.broadcast %19 : vector<1x128xf32> to vector<2x128xf32>
    %167 = arith.addf %165, %166 : vector<2x128xf32>
    %168 = vector.extract_strided_slice %18 {offsets = [4, 0, 0], sizes = [1, 2, 128], strides = [1, 1, 1]} : vector<8x2x128xf32> to vector<1x2x128xf32>
    %169 = vector.shape_cast %168 : vector<1x2x128xf32> to vector<2x128xf32>
    %170 = vector.extract_strided_slice %164 {offsets = [0, 0], sizes = [2, 128], strides = [1, 1]} : vector<2x256xf32> to vector<2x128xf32>
    %171 = arith.addf %169, %170 : vector<2x128xf32>
    %172 = vector.broadcast %5 : vector<1x128xf32> to vector<2x128xf32>
    %173 = arith.mulf %171, %172 : vector<2x128xf32>
    %174 = math.tanh %173 : vector<2x128xf32>
    %175 = vector.broadcast %8 : vector<1x128xf32> to vector<2x128xf32>
    %176 = arith.mulf %174, %175 : vector<2x128xf32>
    %177 = vector.broadcast %11 : vector<1x128xf32> to vector<2x128xf32>
    %178 = arith.addf %176, %177 : vector<2x128xf32>
    %179 = vector.extract_strided_slice %178 {offsets = [0, 0], sizes = [2, 32], strides = [1, 1]} : vector<2x128xf32> to vector<2x32xf32>
    %180 = vector.extract_strided_slice %178 {offsets = [0, 32], sizes = [2, 32], strides = [1, 1]} : vector<2x128xf32> to vector<2x32xf32>
    %181 = vector.extract_strided_slice %178 {offsets = [0, 64], sizes = [2, 32], strides = [1, 1]} : vector<2x128xf32> to vector<2x32xf32>
    %182 = vector.extract_strided_slice %178 {offsets = [0, 96], sizes = [2, 32], strides = [1, 1]} : vector<2x128xf32> to vector<2x32xf32>
    %183 = arith.mulf %180, %144 : vector<2x32xf32>
    %184 = arith.mulf %179, %182 : vector<2x32xf32>
    %185 = arith.addf %183, %184 : vector<2x32xf32>
    %186 = math.tanh %185 : vector<2x32xf32>
    %187 = arith.mulf %181, %186 : vector<2x32xf32>
    %188 = vector.broadcast %5 : vector<1x128xf32> to vector<2x128xf32>
    %189 = arith.mulf %167, %188 : vector<2x128xf32>
    %190 = math.tanh %189 : vector<2x128xf32>
    %191 = vector.broadcast %8 : vector<1x128xf32> to vector<2x128xf32>
    %192 = arith.mulf %190, %191 : vector<2x128xf32>
    %193 = vector.broadcast %11 : vector<1x128xf32> to vector<2x128xf32>
    %194 = arith.addf %192, %193 : vector<2x128xf32>
    %195 = vector.extract_strided_slice %194 {offsets = [0, 0], sizes = [2, 32], strides = [1, 1]} : vector<2x128xf32> to vector<2x32xf32>
    %196 = vector.extract_strided_slice %194 {offsets = [0, 32], sizes = [2, 32], strides = [1, 1]} : vector<2x128xf32> to vector<2x32xf32>
    %197 = vector.extract_strided_slice %194 {offsets = [0, 64], sizes = [2, 32], strides = [1, 1]} : vector<2x128xf32> to vector<2x32xf32>
    %198 = vector.extract_strided_slice %194 {offsets = [0, 96], sizes = [2, 32], strides = [1, 1]} : vector<2x128xf32> to vector<2x32xf32>
    %199 = arith.mulf %196, %160 : vector<2x32xf32>
    %200 = arith.mulf %195, %198 : vector<2x32xf32>
    %201 = arith.addf %199, %200 : vector<2x32xf32>
    %202 = math.tanh %201 : vector<2x32xf32>
    %203 = arith.mulf %197, %202 : vector<2x32xf32>
    %204 = tpu.concatenate %187, %203 in 1 : vector<2x32xf32>, vector<2x32xf32> -> vector<2x64xf32>
    %cst_20 = arith.constant dense<0.000000e+00> : vector<2x256xf32>
    %205 = tpu.matmul %204, %20, %cst_20 {dimension_numbers = #tpu.dot_dimension_numbers<[1], [0], [0], [1], [0, 0, 1, 1], [], []>} : vector<2x64xf32>, vector<64x256xf32>, vector<2x256xf32> -> vector<2x256xf32>
    %206 = vector.extract_strided_slice %205 {offsets = [0, 128], sizes = [2, 128], strides = [1, 1]} : vector<2x256xf32> to vector<2x128xf32>
    %207 = vector.broadcast %19 : vector<1x128xf32> to vector<2x128xf32>
    %208 = arith.addf %206, %207 : vector<2x128xf32>
    %209 = vector.extract_strided_slice %18 {offsets = [5, 0, 0], sizes = [1, 2, 128], strides = [1, 1, 1]} : vector<8x2x128xf32> to vector<1x2x128xf32>
    %210 = vector.shape_cast %209 : vector<1x2x128xf32> to vector<2x128xf32>
    %211 = vector.extract_strided_slice %205 {offsets = [0, 0], sizes = [2, 128], strides = [1, 1]} : vector<2x256xf32> to vector<2x128xf32>
    %212 = arith.addf %210, %211 : vector<2x128xf32>
    %213 = vector.broadcast %5 : vector<1x128xf32> to vector<2x128xf32>
    %214 = arith.mulf %212, %213 : vector<2x128xf32>
    %215 = math.tanh %214 : vector<2x128xf32>
    %216 = vector.broadcast %8 : vector<1x128xf32> to vector<2x128xf32>
    %217 = arith.mulf %215, %216 : vector<2x128xf32>
    %218 = vector.broadcast %11 : vector<1x128xf32> to vector<2x128xf32>
    %219 = arith.addf %217, %218 : vector<2x128xf32>
    %220 = vector.extract_strided_slice %219 {offsets = [0, 0], sizes = [2, 32], strides = [1, 1]} : vector<2x128xf32> to vector<2x32xf32>
    %221 = vector.extract_strided_slice %219 {offsets = [0, 32], sizes = [2, 32], strides = [1, 1]} : vector<2x128xf32> to vector<2x32xf32>
    %222 = vector.extract_strided_slice %219 {offsets = [0, 64], sizes = [2, 32], strides = [1, 1]} : vector<2x128xf32> to vector<2x32xf32>
    %223 = vector.extract_strided_slice %219 {offsets = [0, 96], sizes = [2, 32], strides = [1, 1]} : vector<2x128xf32> to vector<2x32xf32>
    %224 = arith.mulf %221, %185 : vector<2x32xf32>
    %225 = arith.mulf %220, %223 : vector<2x32xf32>
    %226 = arith.addf %224, %225 : vector<2x32xf32>
    %227 = math.tanh %226 : vector<2x32xf32>
    %228 = arith.mulf %222, %227 : vector<2x32xf32>
    %229 = vector.broadcast %5 : vector<1x128xf32> to vector<2x128xf32>
    %230 = arith.mulf %208, %229 : vector<2x128xf32>
    %231 = math.tanh %230 : vector<2x128xf32>
    %232 = vector.broadcast %8 : vector<1x128xf32> to vector<2x128xf32>
    %233 = arith.mulf %231, %232 : vector<2x128xf32>
    %234 = vector.broadcast %11 : vector<1x128xf32> to vector<2x128xf32>
    %235 = arith.addf %233, %234 : vector<2x128xf32>
    %236 = vector.extract_strided_slice %235 {offsets = [0, 0], sizes = [2, 32], strides = [1, 1]} : vector<2x128xf32> to vector<2x32xf32>
    %237 = vector.extract_strided_slice %235 {offsets = [0, 32], sizes = [2, 32], strides = [1, 1]} : vector<2x128xf32> to vector<2x32xf32>
    %238 = vector.extract_strided_slice %235 {offsets = [0, 64], sizes = [2, 32], strides = [1, 1]} : vector<2x128xf32> to vector<2x32xf32>
    %239 = vector.extract_strided_slice %235 {offsets = [0, 96], sizes = [2, 32], strides = [1, 1]} : vector<2x128xf32> to vector<2x32xf32>
    %240 = arith.mulf %237, %201 : vector<2x32xf32>
    %241 = arith.mulf %236, %239 : vector<2x32xf32>
    %242 = arith.addf %240, %241 : vector<2x32xf32>
    %243 = math.tanh %242 : vector<2x32xf32>
    %244 = arith.mulf %238, %243 : vector<2x32xf32>
    %245 = tpu.concatenate %228, %244 in 1 : vector<2x32xf32>, vector<2x32xf32> -> vector<2x64xf32>
    %cst_21 = arith.constant dense<0.000000e+00> : vector<2x256xf32>
    %246 = tpu.matmul %245, %20, %cst_21 {dimension_numbers = #tpu.dot_dimension_numbers<[1], [0], [0], [1], [0, 0, 1, 1], [], []>} : vector<2x64xf32>, vector<64x256xf32>, vector<2x256xf32> -> vector<2x256xf32>
    %247 = vector.extract_strided_slice %246 {offsets = [0, 128], sizes = [2, 128], strides = [1, 1]} : vector<2x256xf32> to vector<2x128xf32>
    %248 = vector.broadcast %19 : vector<1x128xf32> to vector<2x128xf32>
    %249 = arith.addf %247, %248 : vector<2x128xf32>
    %250 = vector.extract_strided_slice %18 {offsets = [6, 0, 0], sizes = [1, 2, 128], strides = [1, 1, 1]} : vector<8x2x128xf32> to vector<1x2x128xf32>
    %251 = vector.shape_cast %250 : vector<1x2x128xf32> to vector<2x128xf32>
    %252 = vector.extract_strided_slice %246 {offsets = [0, 0], sizes = [2, 128], strides = [1, 1]} : vector<2x256xf32> to vector<2x128xf32>
    %253 = arith.addf %251, %252 : vector<2x128xf32>
    %254 = vector.broadcast %5 : vector<1x128xf32> to vector<2x128xf32>
    %255 = arith.mulf %253, %254 : vector<2x128xf32>
    %256 = math.tanh %255 : vector<2x128xf32>
    %257 = vector.broadcast %8 : vector<1x128xf32> to vector<2x128xf32>
    %258 = arith.mulf %256, %257 : vector<2x128xf32>
    %259 = vector.broadcast %11 : vector<1x128xf32> to vector<2x128xf32>
    %260 = arith.addf %258, %259 : vector<2x128xf32>
    %261 = vector.extract_strided_slice %260 {offsets = [0, 0], sizes = [2, 32], strides = [1, 1]} : vector<2x128xf32> to vector<2x32xf32>
    %262 = vector.extract_strided_slice %260 {offsets = [0, 32], sizes = [2, 32], strides = [1, 1]} : vector<2x128xf32> to vector<2x32xf32>
    %263 = vector.extract_strided_slice %260 {offsets = [0, 64], sizes = [2, 32], strides = [1, 1]} : vector<2x128xf32> to vector<2x32xf32>
    %264 = vector.extract_strided_slice %260 {offsets = [0, 96], sizes = [2, 32], strides = [1, 1]} : vector<2x128xf32> to vector<2x32xf32>
    %265 = arith.mulf %262, %226 : vector<2x32xf32>
    %266 = arith.mulf %261, %264 : vector<2x32xf32>
    %267 = arith.addf %265, %266 : vector<2x32xf32>
    %268 = math.tanh %267 : vector<2x32xf32>
    %269 = arith.mulf %263, %268 : vector<2x32xf32>
    %270 = vector.broadcast %5 : vector<1x128xf32> to vector<2x128xf32>
    %271 = arith.mulf %249, %270 : vector<2x128xf32>
    %272 = math.tanh %271 : vector<2x128xf32>
    %273 = vector.broadcast %8 : vector<1x128xf32> to vector<2x128xf32>
    %274 = arith.mulf %272, %273 : vector<2x128xf32>
    %275 = vector.broadcast %11 : vector<1x128xf32> to vector<2x128xf32>
    %276 = arith.addf %274, %275 : vector<2x128xf32>
    %277 = vector.extract_strided_slice %276 {offsets = [0, 0], sizes = [2, 32], strides = [1, 1]} : vector<2x128xf32> to vector<2x32xf32>
    %278 = vector.extract_strided_slice %276 {offsets = [0, 32], sizes = [2, 32], strides = [1, 1]} : vector<2x128xf32> to vector<2x32xf32>
    %279 = vector.extract_strided_slice %276 {offsets = [0, 64], sizes = [2, 32], strides = [1, 1]} : vector<2x128xf32> to vector<2x32xf32>
    %280 = vector.extract_strided_slice %276 {offsets = [0, 96], sizes = [2, 32], strides = [1, 1]} : vector<2x128xf32> to vector<2x32xf32>
    %281 = arith.mulf %278, %242 : vector<2x32xf32>
    %282 = arith.mulf %277, %280 : vector<2x32xf32>
    %283 = arith.addf %281, %282 : vector<2x32xf32>
    %284 = math.tanh %283 : vector<2x32xf32>
    %285 = arith.mulf %279, %284 : vector<2x32xf32>
    %286 = tpu.concatenate %269, %285 in 1 : vector<2x32xf32>, vector<2x32xf32> -> vector<2x64xf32>
    %cst_22 = arith.constant dense<0.000000e+00> : vector<2x256xf32>
    %287 = tpu.matmul %286, %20, %cst_22 {dimension_numbers = #tpu.dot_dimension_numbers<[1], [0], [0], [1], [0, 0, 1, 1], [], []>} : vector<2x64xf32>, vector<64x256xf32>, vector<2x256xf32> -> vector<2x256xf32>
    %288 = vector.extract_strided_slice %287 {offsets = [0, 128], sizes = [2, 128], strides = [1, 1]} : vector<2x256xf32> to vector<2x128xf32>
    %289 = vector.broadcast %19 : vector<1x128xf32> to vector<2x128xf32>
    %290 = arith.addf %288, %289 : vector<2x128xf32>
    %291 = vector.extract_strided_slice %18 {offsets = [7, 0, 0], sizes = [1, 2, 128], strides = [1, 1, 1]} : vector<8x2x128xf32> to vector<1x2x128xf32>
    %292 = vector.shape_cast %291 : vector<1x2x128xf32> to vector<2x128xf32>
    %293 = vector.extract_strided_slice %287 {offsets = [0, 0], sizes = [2, 128], strides = [1, 1]} : vector<2x256xf32> to vector<2x128xf32>
    %294 = arith.addf %292, %293 : vector<2x128xf32>
    %295 = vector.broadcast %5 : vector<1x128xf32> to vector<2x128xf32>
    %296 = arith.mulf %294, %295 : vector<2x128xf32>
    %297 = math.tanh %296 : vector<2x128xf32>
    %298 = vector.broadcast %8 : vector<1x128xf32> to vector<2x128xf32>
    %299 = arith.mulf %297, %298 : vector<2x128xf32>
    %300 = vector.broadcast %11 : vector<1x128xf32> to vector<2x128xf32>
    %301 = arith.addf %299, %300 : vector<2x128xf32>
    %302 = vector.extract_strided_slice %301 {offsets = [0, 0], sizes = [2, 32], strides = [1, 1]} : vector<2x128xf32> to vector<2x32xf32>
    %303 = vector.extract_strided_slice %301 {offsets = [0, 32], sizes = [2, 32], strides = [1, 1]} : vector<2x128xf32> to vector<2x32xf32>
    %304 = vector.extract_strided_slice %301 {offsets = [0, 64], sizes = [2, 32], strides = [1, 1]} : vector<2x128xf32> to vector<2x32xf32>
    %305 = vector.extract_strided_slice %301 {offsets = [0, 96], sizes = [2, 32], strides = [1, 1]} : vector<2x128xf32> to vector<2x32xf32>
    %306 = arith.mulf %303, %267 : vector<2x32xf32>
    %307 = arith.mulf %302, %305 : vector<2x32xf32>
    %308 = arith.addf %306, %307 : vector<2x32xf32>
    %309 = math.tanh %308 : vector<2x32xf32>
    %310 = arith.mulf %304, %309 : vector<2x32xf32>
    %311 = vector.broadcast %5 : vector<1x128xf32> to vector<2x128xf32>
    %312 = arith.mulf %290, %311 : vector<2x128xf32>
    %313 = math.tanh %312 : vector<2x128xf32>
    %314 = vector.broadcast %8 : vector<1x128xf32> to vector<2x128xf32>
    %315 = arith.mulf %313, %314 : vector<2x128xf32>
    %316 = vector.broadcast %11 : vector<1x128xf32> to vector<2x128xf32>
    %317 = arith.addf %315, %316 : vector<2x128xf32>
    %318 = vector.extract_strided_slice %317 {offsets = [0, 0], sizes = [2, 32], strides = [1, 1]} : vector<2x128xf32> to vector<2x32xf32>
    %319 = vector.extract_strided_slice %317 {offsets = [0, 32], sizes = [2, 32], strides = [1, 1]} : vector<2x128xf32> to vector<2x32xf32>
    %320 = vector.extract_strided_slice %317 {offsets = [0, 64], sizes = [2, 32], strides = [1, 1]} : vector<2x128xf32> to vector<2x32xf32>
    %321 = vector.extract_strided_slice %317 {offsets = [0, 96], sizes = [2, 32], strides = [1, 1]} : vector<2x128xf32> to vector<2x32xf32>
    %322 = arith.mulf %319, %283 : vector<2x32xf32>
    %323 = arith.mulf %318, %321 : vector<2x32xf32>
    %324 = arith.addf %322, %323 : vector<2x32xf32>
    %325 = math.tanh %324 : vector<2x32xf32>
    %326 = arith.mulf %320, %325 : vector<2x32xf32>
    %327 = tpu.concatenate %310, %326 in 1 : vector<2x32xf32>, vector<2x32xf32> -> vector<2x64xf32>
    %cst_23 = arith.constant dense<0.000000e+00> : vector<2x256xf32>
    %328 = tpu.matmul %327, %20, %cst_23 {dimension_numbers = #tpu.dot_dimension_numbers<[1], [0], [0], [1], [0, 0, 1, 1], [], []>} : vector<2x64xf32>, vector<64x256xf32>, vector<2x256xf32> -> vector<2x256xf32>
    %329 = vector.extract_strided_slice %328 {offsets = [0, 128], sizes = [2, 128], strides = [1, 1]} : vector<2x256xf32> to vector<2x128xf32>
    %330 = vector.broadcast %19 : vector<1x128xf32> to vector<2x128xf32>
    %331 = arith.addf %329, %330 : vector<2x128xf32>
    %332 = vector.broadcast %5 : vector<1x128xf32> to vector<2x128xf32>
    %333 = arith.mulf %331, %332 : vector<2x128xf32>
    %334 = math.tanh %333 : vector<2x128xf32>
    %335 = vector.broadcast %8 : vector<1x128xf32> to vector<2x128xf32>
    %336 = arith.mulf %334, %335 : vector<2x128xf32>
    %337 = vector.broadcast %11 : vector<1x128xf32> to vector<2x128xf32>
    %338 = arith.addf %336, %337 : vector<2x128xf32>
    %339 = vector.extract_strided_slice %338 {offsets = [0, 0], sizes = [2, 32], strides = [1, 1]} : vector<2x128xf32> to vector<2x32xf32>
    %340 = vector.extract_strided_slice %338 {offsets = [0, 32], sizes = [2, 32], strides = [1, 1]} : vector<2x128xf32> to vector<2x32xf32>
    %341 = vector.extract_strided_slice %338 {offsets = [0, 64], sizes = [2, 32], strides = [1, 1]} : vector<2x128xf32> to vector<2x32xf32>
    %342 = vector.extract_strided_slice %338 {offsets = [0, 96], sizes = [2, 32], strides = [1, 1]} : vector<2x128xf32> to vector<2x32xf32>
    %343 = arith.mulf %340, %324 : vector<2x32xf32>
    %344 = arith.mulf %339, %342 : vector<2x32xf32>
    %345 = arith.addf %343, %344 : vector<2x32xf32>
    %346 = math.tanh %345 : vector<2x32xf32>
    %347 = arith.mulf %341, %346 : vector<2x32xf32>
    %c0_24 = arith.constant 0 : index
    %c0_25 = arith.constant 0 : index
    %348 = vector.load %arg5[%c0_24, %c0_25] : memref<1x32xf32, #tpu.memory_space<vmem>>, vector<1x32xf32>
    %349 = vector.broadcast %348 : vector<1x32xf32> to vector<2x32xf32>
    %350 = arith.mulf %347, %349 : vector<2x32xf32>
    %c0_26 = arith.constant 0 : index
    %c0_27 = arith.constant 0 : index
    %351 = vector.load %arg6[%c0_26, %c0_27] : memref<1x32xf32, #tpu.memory_space<vmem>>, vector<1x32xf32>
    %352 = vector.broadcast %351 : vector<1x32xf32> to vector<2x32xf32>
    %353 = arith.addf %350, %352 : vector<2x32xf32>
    %cst_28 = arith.constant 0.000000e+00 : f32
    %354 = vector.broadcast %cst_28 : f32 to vector<2x32xf32>
    %355 = arith.maximumf %353, %354 : vector<2x32xf32>
    %c0_29 = arith.constant 0 : index
    %c0_30 = arith.constant 0 : index
    %356 = vector.load %arg7[%c0_29, %c0_30] : memref<32x21xf32, #tpu.memory_space<vmem>>, vector<32x21xf32>
    %cst_31 = arith.constant dense<0.000000e+00> : vector<2x21xf32>
    %357 = tpu.matmul %355, %356, %cst_31 {dimension_numbers = #tpu.dot_dimension_numbers<[1], [0], [0], [1], [0, 0, 1, 1], [], []>} : vector<2x32xf32>, vector<32x21xf32>, vector<2x21xf32> -> vector<2x21xf32>
    %c0_32 = arith.constant 0 : index
    %c0_33 = arith.constant 0 : index
    %358 = vector.load %arg8[%c0_32, %c0_33] : memref<1x21xf32, #tpu.memory_space<vmem>>, vector<1x21xf32>
    %359 = vector.broadcast %358 : vector<1x21xf32> to vector<2x21xf32>
    %360 = arith.addf %357, %359 : vector<2x21xf32>
    %c0_34 = arith.constant 0 : index
    %c0_35 = arith.constant 0 : index
    %361 = vector.load %arg9[%c0_34, %c0_35] : memref<1x21xf32, #tpu.memory_space<vmem>>, vector<1x21xf32>
    %362 = vector.broadcast %361 : vector<1x21xf32> to vector<2x21xf32>
    %363 = arith.mulf %360, %362 : vector<2x21xf32>
    %c0_36 = arith.constant 0 : index
    %c0_37 = arith.constant 0 : index
    %364 = vector.load %arg10[%c0_36, %c0_37] : memref<1x21xf32, #tpu.memory_space<vmem>>, vector<1x21xf32>
    %365 = vector.broadcast %364 : vector<1x21xf32> to vector<2x21xf32>
    %366 = arith.addf %363, %365 : vector<2x21xf32>
    %cst_38 = arith.constant 0.000000e+00 : f32
    %367 = vector.broadcast %cst_38 : f32 to vector<2x21xf32>
    %368 = arith.maximumf %366, %367 : vector<2x21xf32>
    %c0_39 = arith.constant 0 : index
    %c0_40 = arith.constant 0 : index
    %369 = vector.load %arg11[%c0_39, %c0_40] : memref<21x10xf32, #tpu.memory_space<vmem>>, vector<21x10xf32>
    %cst_41 = arith.constant dense<0.000000e+00> : vector<2x10xf32>
    %370 = tpu.matmul %368, %369, %cst_41 {dimension_numbers = #tpu.dot_dimension_numbers<[1], [0], [0], [1], [0, 0, 1, 1], [], []>} : vector<2x21xf32>, vector<21x10xf32>, vector<2x10xf32> -> vector<2x10xf32>
    %c0_42 = arith.constant 0 : index
    %c0_43 = arith.constant 0 : index
    %371 = vector.load %arg12[%c0_42, %c0_43] : memref<1x10xf32, #tpu.memory_space<vmem>>, vector<1x10xf32>
    %372 = vector.broadcast %371 : vector<1x10xf32> to vector<2x10xf32>
    %373 = arith.addf %370, %372 : vector<2x10xf32>
    %c0_44 = arith.constant 0 : index
    %c0_45 = arith.constant 0 : index
    %374 = vector.load %arg13[%c0_44, %c0_45] : memref<1x10xf32, #tpu.memory_space<vmem>>, vector<1x10xf32>
    %375 = vector.broadcast %374 : vector<1x10xf32> to vector<2x10xf32>
    %376 = arith.mulf %373, %375 : vector<2x10xf32>
    %c0_46 = arith.constant 0 : index
    %c0_47 = arith.constant 0 : index
    %377 = vector.load %arg14[%c0_46, %c0_47] : memref<1x10xf32, #tpu.memory_space<vmem>>, vector<1x10xf32>
    %378 = vector.broadcast %377 : vector<1x10xf32> to vector<2x10xf32>
    %379 = arith.addf %376, %378 : vector<2x10xf32>
    %cst_48 = arith.constant 0.000000e+00 : f32
    %380 = vector.broadcast %cst_48 : f32 to vector<2x10xf32>
    %381 = arith.maximumf %379, %380 : vector<2x10xf32>
    %c0_49 = arith.constant 0 : index
    %c0_50 = arith.constant 0 : index
    %382 = vector.load %arg15[%c0_49, %c0_50] : memref<10x4xf32, #tpu.memory_space<vmem>>, vector<10x4xf32>
    %cst_51 = arith.constant dense<0.000000e+00> : vector<2x4xf32>
    %383 = tpu.matmul %381, %382, %cst_51 {dimension_numbers = #tpu.dot_dimension_numbers<[1], [0], [0], [1], [0, 0, 1, 1], [], []>} : vector<2x10xf32>, vector<10x4xf32>, vector<2x4xf32> -> vector<2x4xf32>
    %c0_52 = arith.constant 0 : index
    %c0_53 = arith.constant 0 : index
    %384 = vector.load %arg16[%c0_52, %c0_53] : memref<1x4xf32, #tpu.memory_space<vmem>>, vector<1x4xf32>
    %385 = vector.broadcast %384 : vector<1x4xf32> to vector<2x4xf32>
    %386 = arith.addf %383, %385 : vector<2x4xf32>
    %cst_54 = arith.constant 5.000000e-01 : f32
    %387 = vector.broadcast %cst_54 : f32 to vector<2x4xf32>
    %388 = arith.mulf %387, %386 : vector<2x4xf32>
    %389 = math.tanh %388 : vector<2x4xf32>
    %cst_55 = arith.constant 1.000000e+00 : f32
    %390 = vector.broadcast %cst_55 : f32 to vector<2x4xf32>
    %391 = arith.addf %389, %390 : vector<2x4xf32>
    %cst_56 = arith.constant 5.000000e-01 : f32
    %392 = vector.broadcast %cst_56 : f32 to vector<2x4xf32>
    %393 = arith.mulf %392, %391 : vector<2x4xf32>
    %c0_57 = arith.constant 0 : index
    %c0_58 = arith.constant 0 : index
    %394 = vector.load %arg17[%c0_57, %c0_58] : memref<2x4xf32, #tpu.memory_space<vmem>>, vector<2x4xf32>
    tpu.vector_store %arg17[%c0_57, %c0_58], %393 {strides = array<i32>} : memref<2x4xf32, #tpu.memory_space<vmem>>, vector<2x4xf32>,
    return
  }
}

</mosaic_0001>

<llo_original>
// kernel: lstm_model_forward.1
$region0: #{lstm_model_forward.1}
  #allocation0 [shape = 'u32[]', space=smem, size = 0x4, offset = 0x4, fixed_abs, tag = 'smem constant byte address 0x4 - core index']
  #allocation1 [shape = 'u32[72,128]{1,0:T(1,128)}', space=vmem, size = 0x9000, scoped, tag = 'internal scratch']
  %s0 = inlined_call_operand.vmem [shape: f32[16,16], index: 0, kind: input, shape index: {}]
  %s1 = inlined_call_operand.vmem [shape: f32[16,128], index: 1, kind: input, shape index: {}]
  %s2 = inlined_call_operand.vmem [shape: f32[1,128], index: 2, kind: input, shape index: {}]
  %s3 = inlined_call_operand.vmem [shape: f32[64,256], index: 3, kind: input, shape index: {}]
  %s4 = inlined_call_operand.vmem [shape: f32[1,128], index: 4, kind: input, shape index: {}]
  %s5 = inlined_call_operand.vmem [shape: f32[1,32], index: 5, kind: input, shape index: {}]
  %s6 = inlined_call_operand.vmem [shape: f32[1,32], index: 6, kind: input, shape index: {}]
  %s7 = inlined_call_operand.vmem [shape: f32[32,21], index: 7, kind: input, shape index: {}]
  %s8 = inlined_call_operand.vmem [shape: f32[1,21], index: 8, kind: input, shape index: {}]
  %s9 = inlined_call_operand.vmem [shape: f32[1,21], index: 9, kind: input, shape index: {}]
  %s10 = inlined_call_operand.vmem [shape: f32[1,21], index: 10, kind: input, shape index: {}]
  %s11 = inlined_call_operand.vmem [shape: f32[21,10], index: 11, kind: input, shape index: {}]
  %s12 = inlined_call_operand.vmem [shape: f32[1,10], index: 12, kind: input, shape index: {}]
  %s13 = inlined_call_operand.vmem [shape: f32[1,10], index: 13, kind: input, shape index: {}]
  %s14 = inlined_call_operand.vmem [shape: f32[1,10], index: 14, kind: input, shape index: {}]
  %s15 = inlined_call_operand.vmem [shape: f32[10,4], index: 15, kind: input, shape index: {}]
  %s16 = inlined_call_operand.vmem [shape: f32[1,4], index: 16, kind: input, shape index: {}]
  %s17 = inlined_call_operand.hbm [shape: f32[2,4], index: 17, kind: output, shape index: {}]
  %s18 = sld [smem:[#allocation0]]
  $region78: #{lstm_model_forward.1} parent=0
    _
  %s20 = ssub.s32 1, %s18
  %s21 = scalar_select 0, %s20, %s18
  $region1: #{lstm_model_forward.1} parent=0
    #allocation2 [shape = 'u8[1024]{0}', space=vmem, size = 0x400, scoped, tag = 'output window, operand 0, single buffered']
    #allocation3 [shape = 's32[1]{0}', space=sflag, size = 0x4, scoped, tag = 'scoped memory for lstm_model_forward.1']
    %22 = vsyncpa [#allocation3], 0
    // Predicated region
    $region2: #{lstm_model_forward.1} parent=1 // pred_check
      _
    $region3: #{lstm_model_forward.1} parent=1 // pred_check_branch
      %24 = sbr.rel (0) target = $region5
    $region4: #{lstm_model_forward.1} parent=1 // pred_region
      _
    $region5: #{lstm_model_forward.1} parent=1 // pred_fallthru
      _
    // Predicated region
    $region6: #{lstm_model_forward.1} parent=1 // pred_check
      _
    $region7: #{lstm_model_forward.1} parent=1 // pred_check_branch
      %26 = sbr.rel (0) target = $region9
    $region8: #{lstm_model_forward.1} parent=1 // pred_region
      _
    $region9: #{lstm_model_forward.1} parent=1 // pred_fallthru
      _
    // Predicated region
    $region10: #{lstm_model_forward.1} parent=1 // pred_check
      _
    $region11: #{lstm_model_forward.1} parent=1 // pred_check_branch
      %28 = sbr.rel (0) target = $region13
    $region12: #{lstm_model_forward.1} parent=1 // pred_region
      _
    $region13: #{lstm_model_forward.1} parent=1 // pred_fallthru
      _
    // Predicated region
    $region14: #{lstm_model_forward.1} parent=1 // pred_check
      _
    $region15: #{lstm_model_forward.1} parent=1 // pred_check_branch
      %30 = sbr.rel (0) target = $region17
    $region16: #{lstm_model_forward.1} parent=1 // pred_region
      _
    $region17: #{lstm_model_forward.1} parent=1 // pred_fallthru
      _
    // Predicated region
    $region18: #{lstm_model_forward.1} parent=1 // pred_check
      _
    $region19: #{lstm_model_forward.1} parent=1 // pred_check_branch
      %32 = sbr.rel (0) target = $region21
    $region20: #{lstm_model_forward.1} parent=1 // pred_region
      _
    $region21: #{lstm_model_forward.1} parent=1 // pred_fallthru
      _
    // Predicated region
    $region22: #{lstm_model_forward.1} parent=1 // pred_check
      _
    $region23: #{lstm_model_forward.1} parent=1 // pred_check_branch
      %34 = sbr.rel (0) target = $region25
    $region24: #{lstm_model_forward.1} parent=1 // pred_region
      _
    $region25: #{lstm_model_forward.1} parent=1 // pred_fallthru
      _
    // Predicated region
    $region26: #{lstm_model_forward.1} parent=1 // pred_check
      _
    $region27: #{lstm_model_forward.1} parent=1 // pred_check_branch
      %36 = sbr.rel (0) target = $region29
    $region28: #{lstm_model_forward.1} parent=1 // pred_region
      _
    $region29: #{lstm_model_forward.1} parent=1 // pred_fallthru
      _
    // Predicated region
    $region30: #{lstm_model_forward.1} parent=1 // pred_check
      _
    $region31: #{lstm_model_forward.1} parent=1 // pred_check_branch
      %38 = sbr.rel (0) target = $region33
    $region32: #{lstm_model_forward.1} parent=1 // pred_region
      _
    $region33: #{lstm_model_forward.1} parent=1 // pred_fallthru
      _
    // Predicated region
    $region34: #{lstm_model_forward.1} parent=1 // pred_check
      _
    $region35: #{lstm_model_forward.1} parent=1 // pred_check_branch
      %40 = sbr.rel (0) target = $region37
    $region36: #{lstm_model_forward.1} parent=1 // pred_region
      _
    $region37: #{lstm_model_forward.1} parent=1 // pred_fallthru
      _
    // Predicated region
    $region38: #{lstm_model_forward.1} parent=1 // pred_check
      _
    $region39: #{lstm_model_forward.1} parent=1 // pred_check_branch
      %42 = sbr.rel (0) target = $region41
    $region40: #{lstm_model_forward.1} parent=1 // pred_region
      _
    $region41: #{lstm_model_forward.1} parent=1 // pred_fallthru
      _
    // Predicated region
    $region42: #{lstm_model_forward.1} parent=1 // pred_check
      _
    $region43: #{lstm_model_forward.1} parent=1 // pred_check_branch
      %44 = sbr.rel (0) target = $region45
    $region44: #{lstm_model_forward.1} parent=1 // pred_region
      _
    $region45: #{lstm_model_forward.1} parent=1 // pred_fallthru
      _
    // Predicated region
    $region46: #{lstm_model_forward.1} parent=1 // pred_check
      _
    $region47: #{lstm_model_forward.1} parent=1 // pred_check_branch
      %46 = sbr.rel (0) target = $region49
    $region48: #{lstm_model_forward.1} parent=1 // pred_region
      _
    $region49: #{lstm_model_forward.1} parent=1 // pred_fallthru
      _
    // Predicated region
    $region50: #{lstm_model_forward.1} parent=1 // pred_check
      _
    $region51: #{lstm_model_forward.1} parent=1 // pred_check_branch
      %48 = sbr.rel (0) target = $region53
    $region52: #{lstm_model_forward.1} parent=1 // pred_region
      _
    $region53: #{lstm_model_forward.1} parent=1 // pred_fallthru
      _
    // Predicated region
    $region54: #{lstm_model_forward.1} parent=1 // pred_check
      _
    $region55: #{lstm_model_forward.1} parent=1 // pred_check_branch
      %50 = sbr.rel (0) target = $region57
    $region56: #{lstm_model_forward.1} parent=1 // pred_region
      _
    $region57: #{lstm_model_forward.1} parent=1 // pred_fallthru
      _
    // Predicated region
    $region58: #{lstm_model_forward.1} parent=1 // pred_check
      _
    $region59: #{lstm_model_forward.1} parent=1 // pred_check_branch
      %52 = sbr.rel (0) target = $region61
    $region60: #{lstm_model_forward.1} parent=1 // pred_region
      _
    $region61: #{lstm_model_forward.1} parent=1 // pred_fallthru
      _
    // Predicated region
    $region62: #{lstm_model_forward.1} parent=1 // pred_check
      _
    $region63: #{lstm_model_forward.1} parent=1 // pred_check_branch
      %54 = sbr.rel (0) target = $region65
    $region64: #{lstm_model_forward.1} parent=1 // pred_region
      _
    $region65: #{lstm_model_forward.1} parent=1 // pred_fallthru
      _
    // Predicated region
    $region66: #{lstm_model_forward.1} parent=1 // pred_check
      _
    $region67: #{lstm_model_forward.1} parent=1 // pred_check_branch
      %56 = sbr.rel (0) target = $region69
    $region68: #{lstm_model_forward.1} parent=1 // pred_region
      _
    $region69: #{lstm_model_forward.1} parent=1 // pred_fallthru
      _
    %v57 = vlaneseq
    %v58 = vand.u32 %v57, 127
    %vm59 = vcmp.lt.s32.totalorder %v58, 96
    %v60 = vsel %vm59, 0.5, 1.0
    %v61 = vsel %vm59, 0.5, 0.0
    %v62 = vld [vmem:[%s0] sm:$0xff]
    %v63 = vld [vmem:[%s0 + $0x8] sm:$0xff]
    %v64 = vld [vmem:[%s1] sm:$0xff]
    %v65 = vld [vmem:[%s1 + $0x8] sm:$0xff]
    %v66 = vld [vmem:[%s2] sm:$0x1]
    %v68 = vperm.slane %v66, 0
    %vm70 = vcmask 130048
    %v72 = vsel %vm70, %v62, 0
    %v75 = vsel %vm70, %v63, 0
    %77 = vmatpush.msra.mxu0 0.0
    %78 = vmatpush.msra.mxu0 0.0
    %79 = vmatpush.msra.mxu0 0.0
    %80 = vmatpush.msra.mxu0 0.0
    %81 = vmatpush.msra.mxu0 0.0
    %82 = vmatpush.msra.mxu0 0.0
    %83 = vmatpush.msra.mxu0 0.0
    %84 = vmatpush.msra.mxu0 0.0
    %85 = vmatpush.msra.mxu0 0.0
    %86 = vmatpush.msra.mxu0 0.0
    %87 = vmatpush.msra.mxu0 0.0
    %88 = vmatpush.msra.mxu0 0.0
    %89 = vmatpush.msra.mxu0 0.0
    %90 = vmatpush.msra.mxu0 0.0
    %91 = vmatpush.msra.mxu0 %v65
    %92 = vmatpush.msra.mxu0 %v64
    %93 = vmatmul.f32.gmra.mxu0 %v72
    %v94 = vpop.f32.mrf.mxu0
    %v95 = vadd.f32 %v68, %v94
    %96 = vmatmul.f32.gmra.mxu0 %v75
    %v97 = vpop.f32.mrf.mxu0
    %v98 = vadd.f32 %v68, %v97
    %99 = vdwg.mxu0
    %v102 = vrot.slane %v95, 2
    %v103 = vrot.slane %v95, 4
    %v104 = vrot.slane %v95, 6
    %v105 = vrot.slane %v98, 2
    %v106 = vrot.slane %v98, 4
    %v107 = vrot.slane %v98, 6
    %v114 = vld [vmem:[%s4] sm:$0x1]
    %v115 = vld [vmem:[%s3] sm:$0xff]
    %v116 = vld [vmem:[%s3 + $0x8] sm:$0xff]
    %v117 = vld [vmem:[%s3 + $0x10] sm:$0xff]
    %v118 = vld [vmem:[%s3 + $0x18] sm:$0xff]
    %v119 = vld [vmem:[%s3 + $0x20] sm:$0xff]
    %v120 = vld [vmem:[%s3 + $0x28] sm:$0xff]
    %v121 = vld [vmem:[%s3 + $0x30] sm:$0xff]
    %v122 = vld [vmem:[%s3 + $0x38] sm:$0xff]
    %v123 = vld [vmem:[%s3 + $0x40] sm:$0xff]
    %v124 = vld [vmem:[%s3 + $0x48] sm:$0xff]
    %v125 = vld [vmem:[%s3 + $0x50] sm:$0xff]
    %v126 = vld [vmem:[%s3 + $0x58] sm:$0xff]
    %v127 = vld [vmem:[%s3 + $0x60] sm:$0xff]
    %v128 = vld [vmem:[%s3 + $0x68] sm:$0xff]
    %v129 = vld [vmem:[%s3 + $0x70] sm:$0xff]
    %v130 = vld [vmem:[%s3 + $0x78] sm:$0xff]
    %v131 = vmul.f32 %v95, %v60
    %v132 = vtanh.pop %v131
    %v133 = vmul.f32 %v132, %v60
    %v134 = vadd.f32 %v133, %v61
    %v135 = vmul.f32 %v134, 0.0
    %137 = vrot.lane.b32.xlu0 %v134, 32
    %v138 = vpop.permute.xlu0 %137
    %v140 = vmul.f32 %v134, %v138
    %142 = vrot.lane.b32.xlu0 %v140, 32
    %v143 = vpop.permute.xlu0 %142
    %v145 = vadd.f32 %v135, %v143
    %v146 = vtanh.pop %v145
    %148 = vrot.lane.b32.xlu0 %v146, 32
    %v149 = vpop.permute.xlu0 %148
    %v151 = vmul.f32 %v134, %v149
    %153 = vst [vmem:[#allocation1] ss:$4 sm:$0xff] %v151
    %v154 = vld.sshfl [vmem:[#allocation1] sm:$0xff pattern:$0x73625140]
    %155 = vrot.lane.b32.xlu0 %v154, 64
    %v156 = vpop.permute.xlu0 %155
    %vm158 = vcmask 261120
    %v159 = vsel %vm158, %v156, 0.0
    %vm160 = vcmask 523264
    %v162 = vsel %vm160, %v159, 0
    %164 = vmatpush.msra.mxu0 0.0
    %165 = vmatpush.msra.mxu0 0.0
    %166 = vmatpush.msra.mxu0 0.0
    %167 = vmatpush.msra.mxu0 0.0
    %168 = vmatpush.msra.mxu0 0.0
    %169 = vmatpush.msra.mxu0 0.0
    %170 = vmatpush.msra.mxu0 0.0
    %171 = vmatpush.msra.mxu0 0.0
    %172 = vmatpush.msra.mxu0 %v129
    %173 = vmatpush.msra.mxu0 %v127
    %174 = vmatpush.msra.mxu0 %v125
    %175 = vmatpush.msra.mxu0 %v123
    %176 = vmatpush.msra.mxu0 %v121
    %177 = vmatpush.msra.mxu0 %v119
    %178 = vmatpush.msra.mxu0 %v117
    %179 = vmatpush.msra.mxu0 %v115
    %180 = vmatmul.f32.gmra.mxu0 %v162
    %v181 = vpop.f32.mrf.mxu0
    %v182 = vadd.f32 0.0, %v181
    %183 = vdwg.mxu0
    %184 = vmatpush.msra.mxu0 0.0
    %185 = vmatpush.msra.mxu0 0.0
    %186 = vmatpush.msra.mxu0 0.0
    %187 = vmatpush.msra.mxu0 0.0
    %188 = vmatpush.msra.mxu0 0.0
    %189 = vmatpush.msra.mxu0 0.0
    %190 = vmatpush.msra.mxu0 0.0
    %191 = vmatpush.msra.mxu0 0.0
    %192 = vmatpush.msra.mxu0 %v130
    %193 = vmatpush.msra.mxu0 %v128
    %194 = vmatpush.msra.mxu0 %v126
    %195 = vmatpush.msra.mxu0 %v124
    %196 = vmatpush.msra.mxu0 %v122
    %197 = vmatpush.msra.mxu0 %v120
    %198 = vmatpush.msra.mxu0 %v118
    %199 = vmatpush.msra.mxu0 %v116
    %200 = vmatmul.f32.gmra.mxu0 %v162
    %v201 = vpop.f32.mrf.mxu0
    %v202 = vadd.f32 0.0, %v201
    %203 = vdwg.mxu0
    %v205 = vperm.slane %v114, 0
    %v207 = vadd.f32 %v202, %v205
    %v208 = vadd.f32 %v102, %v182
    %v209 = vmul.f32 %v208, %v60
    %v210 = vtanh.pop %v209
    %v211 = vmul.f32 %v210, %v60
    %v212 = vadd.f32 %v211, %v61
    %v213 = vmul.f32 %v212, %v145
    %215 = vrot.lane.b32.xlu0 %v212, 32
    %v216 = vpop.permute.xlu0 %215
    %v218 = vmul.f32 %v212, %v216
    %220 = vrot.lane.b32.xlu0 %v218, 32
    %v221 = vpop.permute.xlu0 %220
    %v223 = vadd.f32 %v213, %v221
    %v224 = vtanh.pop %v223
    %226 = vrot.lane.b32.xlu0 %v224, 32
    %v227 = vpop.permute.xlu0 %226
    %v229 = vmul.f32 %v212, %v227
    %v230 = vmul.f32 %v207, %v60
    %v231 = vtanh.pop %v230
    %v232 = vmul.f32 %v231, %v60
    %v233 = vadd.f32 %v232, %v61
    %v234 = vmul.f32 %v233, 0.0
    %236 = vrot.lane.b32.xlu0 %v233, 32
    %v237 = vpop.permute.xlu0 %236
    %v239 = vmul.f32 %v233, %v237
    %241 = vrot.lane.b32.xlu0 %v239, 32
    %v242 = vpop.permute.xlu0 %241
    %v244 = vadd.f32 %v234, %v242
    %v245 = vtanh.pop %v244
    %247 = vrot.lane.b32.xlu0 %v245, 32
    %v248 = vpop.permute.xlu0 %247
    %v250 = vmul.f32 %v233, %v248
    %252 = vst [vmem:[#allocation1] ss:$4 sm:$0xff] %v229
    %v253 = vld.sshfl [vmem:[#allocation1] sm:$0xff pattern:$0x73625140]
    %254 = vrot.lane.b32.xlu0 %v253, 64
    %v255 = vpop.permute.xlu0 %254
    %258 = vrot.lane.b32.xlu0 %v250, 96
    %v259 = vpop.permute.xlu0 %258
    %v261 = vsel %vm158, %v255, %v259
    %v263 = vsel %vm160, %v261, 0
    %265 = vmatpush.msra.mxu0 0.0
    %266 = vmatpush.msra.mxu0 0.0
    %267 = vmatpush.msra.mxu0 0.0
    %268 = vmatpush.msra.mxu0 0.0
    %269 = vmatpush.msra.mxu0 0.0
    %270 = vmatpush.msra.mxu0 0.0
    %271 = vmatpush.msra.mxu0 0.0
    %272 = vmatpush.msra.mxu0 0.0
    %273 = vmatpush.msra.mxu0 %v129
    %274 = vmatpush.msra.mxu0 %v127
    %275 = vmatpush.msra.mxu0 %v125
    %276 = vmatpush.msra.mxu0 %v123
    %277 = vmatpush.msra.mxu0 %v121
    %278 = vmatpush.msra.mxu0 %v119
    %279 = vmatpush.msra.mxu0 %v117
    %280 = vmatpush.msra.mxu0 %v115
    %281 = vmatmul.f32.gmra.mxu0 %v263
    %v282 = vpop.f32.mrf.mxu0
    %v283 = vadd.f32 0.0, %v282
    %284 = vdwg.mxu0
    %285 = vmatpush.msra.mxu0 0.0
    %286 = vmatpush.msra.mxu0 0.0
    %287 = vmatpush.msra.mxu0 0.0
    %288 = vmatpush.msra.mxu0 0.0
    %289 = vmatpush.msra.mxu0 0.0
    %290 = vmatpush.msra.mxu0 0.0
    %291 = vmatpush.msra.mxu0 0.0
    %292 = vmatpush.msra.mxu0 0.0
    %293 = vmatpush.msra.mxu0 %v130
    %294 = vmatpush.msra.mxu0 %v128
    %295 = vmatpush.msra.mxu0 %v126
    %296 = vmatpush.msra.mxu0 %v124
    %297 = vmatpush.msra.mxu0 %v122
    %298 = vmatpush.msra.mxu0 %v120
    %299 = vmatpush.msra.mxu0 %v118
    %300 = vmatpush.msra.mxu0 %v116
    %301 = vmatmul.f32.gmra.mxu0 %v263
    %v302 = vpop.f32.mrf.mxu0
    %v303 = vadd.f32 0.0, %v302
    %304 = vdwg.mxu0
    %v305 = vadd.f32 %v303, %v205
    %v306 = vadd.f32 %v103, %v283
    %v307 = vmul.f32 %v306, %v60
    %v308 = vtanh.pop %v307
    %v309 = vmul.f32 %v308, %v60
    %v310 = vadd.f32 %v309, %v61
    %v311 = vmul.f32 %v310, %v223
    %313 = vrot.lane.b32.xlu0 %v310, 32
    %v314 = vpop.permute.xlu0 %313
    %v316 = vmul.f32 %v310, %v314
    %318 = vrot.lane.b32.xlu0 %v316, 32
    %v319 = vpop.permute.xlu0 %318
    %v321 = vadd.f32 %v311, %v319
    %v322 = vtanh.pop %v321
    %324 = vrot.lane.b32.xlu0 %v322, 32
    %v325 = vpop.permute.xlu0 %324
    %v327 = vmul.f32 %v310, %v325
    %v328 = vmul.f32 %v305, %v60
    %v329 = vtanh.pop %v328
    %v330 = vmul.f32 %v329, %v60
    %v331 = vadd.f32 %v330, %v61
    %v332 = vmul.f32 %v331, %v244
    %334 = vrot.lane.b32.xlu0 %v331, 32
    %v335 = vpop.permute.xlu0 %334
    %v337 = vmul.f32 %v331, %v335
    %339 = vrot.lane.b32.xlu0 %v337, 32
    %v340 = vpop.permute.xlu0 %339
    %v342 = vadd.f32 %v332, %v340
    %v343 = vtanh.pop %v342
    %345 = vrot.lane.b32.xlu0 %v343, 32
    %v346 = vpop.permute.xlu0 %345
    %v348 = vmul.f32 %v331, %v346
    %350 = vst [vmem:[#allocation1] ss:$4 sm:$0xff] %v327
    %v351 = vld.sshfl [vmem:[#allocation1] sm:$0xff pattern:$0x73625140]
    %352 = vrot.lane.b32.xlu0 %v351, 64
    %v353 = vpop.permute.xlu0 %352
    %356 = vrot.lane.b32.xlu0 %v348, 96
    %v357 = vpop.permute.xlu0 %356
    %v359 = vsel %vm158, %v353, %v357
    %v361 = vsel %vm160, %v359, 0
    %363 = vmatpush.msra.mxu0 0.0
    %364 = vmatpush.msra.mxu0 0.0
    %365 = vmatpush.msra.mxu0 0.0
    %366 = vmatpush.msra.mxu0 0.0
    %367 = vmatpush.msra.mxu0 0.0
    %368 = vmatpush.msra.mxu0 0.0
    %369 = vmatpush.msra.mxu0 0.0
    %370 = vmatpush.msra.mxu0 0.0
    %371 = vmatpush.msra.mxu0 %v129
    %372 = vmatpush.msra.mxu0 %v127
    %373 = vmatpush.msra.mxu0 %v125
    %374 = vmatpush.msra.mxu0 %v123
    %375 = vmatpush.msra.mxu0 %v121
    %376 = vmatpush.msra.mxu0 %v119
    %377 = vmatpush.msra.mxu0 %v117
    %378 = vmatpush.msra.mxu0 %v115
    %379 = vmatmul.f32.gmra.mxu0 %v361
    %v380 = vpop.f32.mrf.mxu0
    %v381 = vadd.f32 0.0, %v380
    %382 = vdwg.mxu0
    %383 = vmatpush.msra.mxu0 0.0
    %384 = vmatpush.msra.mxu0 0.0
    %385 = vmatpush.msra.mxu0 0.0
    %386 = vmatpush.msra.mxu0 0.0
    %387 = vmatpush.msra.mxu0 0.0
    %388 = vmatpush.msra.mxu0 0.0
    %389 = vmatpush.msra.mxu0 0.0
    %390 = vmatpush.msra.mxu0 0.0
    %391 = vmatpush.msra.mxu0 %v130
    %392 = vmatpush.msra.mxu0 %v128
    %393 = vmatpush.msra.mxu0 %v126
    %394 = vmatpush.msra.mxu0 %v124
    %395 = vmatpush.msra.mxu0 %v122
    %396 = vmatpush.msra.mxu0 %v120
    %397 = vmatpush.msra.mxu0 %v118
    %398 = vmatpush.msra.mxu0 %v116
    %399 = vmatmul.f32.gmra.mxu0 %v361
    %v400 = vpop.f32.mrf.mxu0
    %v401 = vadd.f32 0.0, %v400
    %402 = vdwg.mxu0
    %v403 = vadd.f32 %v401, %v205
    %v404 = vadd.f32 %v104, %v381
    %v405 = vmul.f32 %v404, %v60
    %v406 = vtanh.pop %v405
    %v407 = vmul.f32 %v406, %v60
    %v408 = vadd.f32 %v407, %v61
    %v409 = vmul.f32 %v408, %v321
    %411 = vrot.lane.b32.xlu0 %v408, 32
    %v412 = vpop.permute.xlu0 %411
    %v414 = vmul.f32 %v408, %v412
    %416 = vrot.lane.b32.xlu0 %v414, 32
    %v417 = vpop.permute.xlu0 %416
    %v419 = vadd.f32 %v409, %v417
    %v420 = vtanh.pop %v419
    %422 = vrot.lane.b32.xlu0 %v420, 32
    %v423 = vpop.permute.xlu0 %422
    %v425 = vmul.f32 %v408, %v423
    %v426 = vmul.f32 %v403, %v60
    %v427 = vtanh.pop %v426
    %v428 = vmul.f32 %v427, %v60
    %v429 = vadd.f32 %v428, %v61
    %v430 = vmul.f32 %v429, %v342
    %432 = vrot.lane.b32.xlu0 %v429, 32
    %v433 = vpop.permute.xlu0 %432
    %v435 = vmul.f32 %v429, %v433
    %437 = vrot.lane.b32.xlu0 %v435, 32
    %v438 = vpop.permute.xlu0 %437
    %v440 = vadd.f32 %v430, %v438
    %v441 = vtanh.pop %v440
    %443 = vrot.lane.b32.xlu0 %v441, 32
    %v444 = vpop.permute.xlu0 %443
    %v446 = vmul.f32 %v429, %v444
    %448 = vst [vmem:[#allocation1] ss:$4 sm:$0xff] %v425
    %v449 = vld.sshfl [vmem:[#allocation1] sm:$0xff pattern:$0x73625140]
    %450 = vrot.lane.b32.xlu0 %v449, 64
    %v451 = vpop.permute.xlu0 %450
    %454 = vrot.lane.b32.xlu0 %v446, 96
    %v455 = vpop.permute.xlu0 %454
    %v457 = vsel %vm158, %v451, %v455
    %v459 = vsel %vm160, %v457, 0
    %461 = vmatpush.msra.mxu0 0.0
    %462 = vmatpush.msra.mxu0 0.0
    %463 = vmatpush.msra.mxu0 0.0
    %464 = vmatpush.msra.mxu0 0.0
    %465 = vmatpush.msra.mxu0 0.0
    %466 = vmatpush.msra.mxu0 0.0
    %467 = vmatpush.msra.mxu0 0.0
    %468 = vmatpush.msra.mxu0 0.0
    %469 = vmatpush.msra.mxu0 %v129
    %470 = vmatpush.msra.mxu0 %v127
    %471 = vmatpush.msra.mxu0 %v125
    %472 = vmatpush.msra.mxu0 %v123
    %473 = vmatpush.msra.mxu0 %v121
    %474 = vmatpush.msra.mxu0 %v119
    %475 = vmatpush.msra.mxu0 %v117
    %476 = vmatpush.msra.mxu0 %v115
    %477 = vmatmul.f32.gmra.mxu0 %v459
    %v478 = vpop.f32.mrf.mxu0
    %v479 = vadd.f32 0.0, %v478
    %480 = vdwg.mxu0
    %481 = vmatpush.msra.mxu0 0.0
    %482 = vmatpush.msra.mxu0 0.0
    %483 = vmatpush.msra.mxu0 0.0
    %484 = vmatpush.msra.mxu0 0.0
    %485 = vmatpush.msra.mxu0 0.0
    %486 = vmatpush.msra.mxu0 0.0
    %487 = vmatpush.msra.mxu0 0.0
    %488 = vmatpush.msra.mxu0 0.0
    %489 = vmatpush.msra.mxu0 %v130
    %490 = vmatpush.msra.mxu0 %v128
    %491 = vmatpush.msra.mxu0 %v126
    %492 = vmatpush.msra.mxu0 %v124
    %493 = vmatpush.msra.mxu0 %v122
    %494 = vmatpush.msra.mxu0 %v120
    %495 = vmatpush.msra.mxu0 %v118
    %496 = vmatpush.msra.mxu0 %v116
    %497 = vmatmul.f32.gmra.mxu0 %v459
    %v498 = vpop.f32.mrf.mxu0
    %v499 = vadd.f32 0.0, %v498
    %500 = vdwg.mxu0
    %v501 = vadd.f32 %v499, %v205
    %v502 = vadd.f32 %v98, %v479
    %v503 = vmul.f32 %v502, %v60
    %v504 = vtanh.pop %v503
    %v505 = vmul.f32 %v504, %v60
    %v506 = vadd.f32 %v505, %v61
    %v507 = vmul.f32 %v506, %v419
    %509 = vrot.lane.b32.xlu0 %v506, 32
    %v510 = vpop.permute.xlu0 %509
    %v512 = vmul.f32 %v506, %v510
    %514 = vrot.lane.b32.xlu0 %v512, 32
    %v515 = vpop.permute.xlu0 %514
    %v517 = vadd.f32 %v507, %v515
    %v518 = vtanh.pop %v517
    %520 = vrot.lane.b32.xlu0 %v518, 32
    %v521 = vpop.permute.xlu0 %520
    %v523 = vmul.f32 %v506, %v521
    %v524 = vmul.f32 %v501, %v60
    %v525 = vtanh.pop %v524
    %v526 = vmul.f32 %v525, %v60
    %v527 = vadd.f32 %v526, %v61
    %v528 = vmul.f32 %v527, %v440
    %530 = vrot.lane.b32.xlu0 %v527, 32
    %v531 = vpop.permute.xlu0 %530
    %v533 = vmul.f32 %v527, %v531
    %535 = vrot.lane.b32.xlu0 %v533, 32
    %v536 = vpop.permute.xlu0 %535
    %v538 = vadd.f32 %v528, %v536
    %v539 = vtanh.pop %v538
    %541 = vrot.lane.b32.xlu0 %v539, 32
    %v542 = vpop.permute.xlu0 %541
    %v544 = vmul.f32 %v527, %v542
    %546 = vst [vmem:[#allocation1] ss:$4 sm:$0xff] %v523
    %v547 = vld.sshfl [vmem:[#allocation1] sm:$0xff pattern:$0x73625140]
    %548 = vrot.lane.b32.xlu0 %v547, 64
    %v549 = vpop.permute.xlu0 %548
    %552 = vrot.lane.b32.xlu0 %v544, 96
    %v553 = vpop.permute.xlu0 %552
    %v555 = vsel %vm158, %v549, %v553
    %v557 = vsel %vm160, %v555, 0
    %559 = vmatpush.msra.mxu0 0.0
    %560 = vmatpush.msra.mxu0 0.0
    %561 = vmatpush.msra.mxu0 0.0
    %562 = vmatpush.msra.mxu0 0.0
    %563 = vmatpush.msra.mxu0 0.0
    %564 = vmatpush.msra.mxu0 0.0
    %565 = vmatpush.msra.mxu0 0.0
    %566 = vmatpush.msra.mxu0 0.0
    %567 = vmatpush.msra.mxu0 %v129
    %568 = vmatpush.msra.mxu0 %v127
    %569 = vmatpush.msra.mxu0 %v125
    %570 = vmatpush.msra.mxu0 %v123
    %571 = vmatpush.msra.mxu0 %v121
    %572 = vmatpush.msra.mxu0 %v119
    %573 = vmatpush.msra.mxu0 %v117
    %574 = vmatpush.msra.mxu0 %v115
    %575 = vmatmul.f32.gmra.mxu0 %v557
    %v576 = vpop.f32.mrf.mxu0
    %v577 = vadd.f32 0.0, %v576
    %578 = vdwg.mxu0
    %579 = vmatpush.msra.mxu0 0.0
    %580 = vmatpush.msra.mxu0 0.0
    %581 = vmatpush.msra.mxu0 0.0
    %582 = vmatpush.msra.mxu0 0.0
    %583 = vmatpush.msra.mxu0 0.0
    %584 = vmatpush.msra.mxu0 0.0
    %585 = vmatpush.msra.mxu0 0.0
    %586 = vmatpush.msra.mxu0 0.0
    %587 = vmatpush.msra.mxu0 %v130
    %588 = vmatpush.msra.mxu0 %v128
    %589 = vmatpush.msra.mxu0 %v126
    %590 = vmatpush.msra.mxu0 %v124
    %591 = vmatpush.msra.mxu0 %v122
    %592 = vmatpush.msra.mxu0 %v120
    %593 = vmatpush.msra.mxu0 %v118
    %594 = vmatpush.msra.mxu0 %v116
    %595 = vmatmul.f32.gmra.mxu0 %v557
    %v596 = vpop.f32.mrf.mxu0
    %v597 = vadd.f32 0.0, %v596
    %598 = vdwg.mxu0
    %v599 = vadd.f32 %v597, %v205
    %v600 = vadd.f32 %v105, %v577
    %v601 = vmul.f32 %v600, %v60
    %v602 = vtanh.pop %v601
    %v603 = vmul.f32 %v602, %v60
    %v604 = vadd.f32 %v603, %v61
    %v605 = vmul.f32 %v604, %v517
    %607 = vrot.lane.b32.xlu0 %v604, 32
    %v608 = vpop.permute.xlu0 %607
    %v610 = vmul.f32 %v604, %v608
    %612 = vrot.lane.b32.xlu0 %v610, 32
    %v613 = vpop.permute.xlu0 %612
    %v615 = vadd.f32 %v605, %v613
    %v616 = vtanh.pop %v615
    %618 = vrot.lane.b32.xlu0 %v616, 32
    %v619 = vpop.permute.xlu0 %618
    %v621 = vmul.f32 %v604, %v619
    %v622 = vmul.f32 %v599, %v60
    %v623 = vtanh.pop %v622
    %v624 = vmul.f32 %v623, %v60
    %v625 = vadd.f32 %v624, %v61
    %v626 = vmul.f32 %v625, %v538
    %628 = vrot.lane.b32.xlu0 %v625, 32
    %v629 = vpop.permute.xlu0 %628
    %v631 = vmul.f32 %v625, %v629
    %633 = vrot.lane.b32.xlu0 %v631, 32
    %v634 = vpop.permute.xlu0 %633
    %v636 = vadd.f32 %v626, %v634
    %v637 = vtanh.pop %v636
    %639 = vrot.lane.b32.xlu0 %v637, 32
    %v640 = vpop.permute.xlu0 %639
    %v642 = vmul.f32 %v625, %v640
    %644 = vst [vmem:[#allocation1] ss:$4 sm:$0xff] %v621
    %v645 = vld.sshfl [vmem:[#allocation1] sm:$0xff pattern:$0x73625140]
    %646 = vrot.lane.b32.xlu0 %v645, 64
    %v647 = vpop.permute.xlu0 %646
    %650 = vrot.lane.b32.xlu0 %v642, 96
    %v651 = vpop.permute.xlu0 %650
    %v653 = vsel %vm158, %v647, %v651
    %v655 = vsel %vm160, %v653, 0
    %657 = vmatpush.msra.mxu0 0.0
    %658 = vmatpush.msra.mxu0 0.0
    %659 = vmatpush.msra.mxu0 0.0
    %660 = vmatpush.msra.mxu0 0.0
    %661 = vmatpush.msra.mxu0 0.0
    %662 = vmatpush.msra.mxu0 0.0
    %663 = vmatpush.msra.mxu0 0.0
    %664 = vmatpush.msra.mxu0 0.0
    %665 = vmatpush.msra.mxu0 %v129
    %666 = vmatpush.msra.mxu0 %v127
    %667 = vmatpush.msra.mxu0 %v125
    %668 = vmatpush.msra.mxu0 %v123
    %669 = vmatpush.msra.mxu0 %v121
    %670 = vmatpush.msra.mxu0 %v119
    %671 = vmatpush.msra.mxu0 %v117
    %672 = vmatpush.msra.mxu0 %v115
    %673 = vmatmul.f32.gmra.mxu0 %v655
    %v674 = vpop.f32.mrf.mxu0
    %v675 = vadd.f32 0.0, %v674
    %676 = vdwg.mxu0
    %677 = vmatpush.msra.mxu0 0.0
    %678 = vmatpush.msra.mxu0 0.0
    %679 = vmatpush.msra.mxu0 0.0
    %680 = vmatpush.msra.mxu0 0.0
    %681 = vmatpush.msra.mxu0 0.0
    %682 = vmatpush.msra.mxu0 0.0
    %683 = vmatpush.msra.mxu0 0.0
    %684 = vmatpush.msra.mxu0 0.0
    %685 = vmatpush.msra.mxu0 %v130
    %686 = vmatpush.msra.mxu0 %v128
    %687 = vmatpush.msra.mxu0 %v126
    %688 = vmatpush.msra.mxu0 %v124
    %689 = vmatpush.msra.mxu0 %v122
    %690 = vmatpush.msra.mxu0 %v120
    %691 = vmatpush.msra.mxu0 %v118
    %692 = vmatpush.msra.mxu0 %v116
    %693 = vmatmul.f32.gmra.mxu0 %v655
    %v694 = vpop.f32.mrf.mxu0
    %v695 = vadd.f32 0.0, %v694
    %696 = vdwg.mxu0
    %v697 = vadd.f32 %v695, %v205
    %v698 = vadd.f32 %v106, %v675
    %v699 = vmul.f32 %v698, %v60
    %v700 = vtanh.pop %v699
    %v701 = vmul.f32 %v700, %v60
    %v702 = vadd.f32 %v701, %v61
    %v703 = vmul.f32 %v702, %v615
    %705 = vrot.lane.b32.xlu0 %v702, 32
    %v706 = vpop.permute.xlu0 %705
    %v708 = vmul.f32 %v702, %v706
    %710 = vrot.lane.b32.xlu0 %v708, 32
    %v711 = vpop.permute.xlu0 %710
    %v713 = vadd.f32 %v703, %v711
    %v714 = vtanh.pop %v713
    %716 = vrot.lane.b32.xlu0 %v714, 32
    %v717 = vpop.permute.xlu0 %716
    %v719 = vmul.f32 %v702, %v717
    %v720 = vmul.f32 %v697, %v60
    %v721 = vtanh.pop %v720
    %v722 = vmul.f32 %v721, %v60
    %v723 = vadd.f32 %v722, %v61
    %v724 = vmul.f32 %v723, %v636
    %726 = vrot.lane.b32.xlu0 %v723, 32
    %v727 = vpop.permute.xlu0 %726
    %v729 = vmul.f32 %v723, %v727
    %731 = vrot.lane.b32.xlu0 %v729, 32
    %v732 = vpop.permute.xlu0 %731
    %v734 = vadd.f32 %v724, %v732
    %v735 = vtanh.pop %v734
    %737 = vrot.lane.b32.xlu0 %v735, 32
    %v738 = vpop.permute.xlu0 %737
    %v740 = vmul.f32 %v723, %v738
    %742 = vst [vmem:[#allocation1] ss:$4 sm:$0xff] %v719
    %v743 = vld.sshfl [vmem:[#allocation1] sm:$0xff pattern:$0x73625140]
    %744 = vrot.lane.b32.xlu0 %v743, 64
    %v745 = vpop.permute.xlu0 %744
    %748 = vrot.lane.b32.xlu0 %v740, 96
    %v749 = vpop.permute.xlu0 %748
    %v751 = vsel %vm158, %v745, %v749
    %v753 = vsel %vm160, %v751, 0
    %755 = vmatpush.msra.mxu0 0.0
    %756 = vmatpush.msra.mxu0 0.0
    %757 = vmatpush.msra.mxu0 0.0
    %758 = vmatpush.msra.mxu0 0.0
    %759 = vmatpush.msra.mxu0 0.0
    %760 = vmatpush.msra.mxu0 0.0
    %761 = vmatpush.msra.mxu0 0.0
    %762 = vmatpush.msra.mxu0 0.0
    %763 = vmatpush.msra.mxu0 %v129
    %764 = vmatpush.msra.mxu0 %v127
    %765 = vmatpush.msra.mxu0 %v125
    %766 = vmatpush.msra.mxu0 %v123
    %767 = vmatpush.msra.mxu0 %v121
    %768 = vmatpush.msra.mxu0 %v119
    %769 = vmatpush.msra.mxu0 %v117
    %770 = vmatpush.msra.mxu0 %v115
    %771 = vmatmul.f32.gmra.mxu0 %v753
    %v772 = vpop.f32.mrf.mxu0
    %v773 = vadd.f32 0.0, %v772
    %774 = vdwg.mxu0
    %775 = vmatpush.msra.mxu0 0.0
    %776 = vmatpush.msra.mxu0 0.0
    %777 = vmatpush.msra.mxu0 0.0
    %778 = vmatpush.msra.mxu0 0.0
    %779 = vmatpush.msra.mxu0 0.0
    %780 = vmatpush.msra.mxu0 0.0
    %781 = vmatpush.msra.mxu0 0.0
    %782 = vmatpush.msra.mxu0 0.0
    %783 = vmatpush.msra.mxu0 %v130
    %784 = vmatpush.msra.mxu0 %v128
    %785 = vmatpush.msra.mxu0 %v126
    %786 = vmatpush.msra.mxu0 %v124
    %787 = vmatpush.msra.mxu0 %v122
    %788 = vmatpush.msra.mxu0 %v120
    %789 = vmatpush.msra.mxu0 %v118
    %790 = vmatpush.msra.mxu0 %v116
    %791 = vmatmul.f32.gmra.mxu0 %v753
    %v792 = vpop.f32.mrf.mxu0
    %v793 = vadd.f32 0.0, %v792
    %794 = vdwg.mxu0
    %v795 = vadd.f32 %v793, %v205
    %v796 = vadd.f32 %v107, %v773
    %v797 = vmul.f32 %v796, %v60
    %v798 = vtanh.pop %v797
    %v799 = vmul.f32 %v798, %v60
    %v800 = vadd.f32 %v799, %v61
    %v801 = vmul.f32 %v800, %v713
    %803 = vrot.lane.b32.xlu0 %v800, 32
    %v804 = vpop.permute.xlu0 %803
    %v806 = vmul.f32 %v800, %v804
    %808 = vrot.lane.b32.xlu0 %v806, 32
    %v809 = vpop.permute.xlu0 %808
    %v811 = vadd.f32 %v801, %v809
    %v812 = vtanh.pop %v811
    %814 = vrot.lane.b32.xlu0 %v812, 32
    %v815 = vpop.permute.xlu0 %814
    %v817 = vmul.f32 %v800, %v815
    %v818 = vmul.f32 %v795, %v60
    %v819 = vtanh.pop %v818
    %v820 = vmul.f32 %v819, %v60
    %v821 = vadd.f32 %v820, %v61
    %v822 = vmul.f32 %v821, %v734
    %824 = vrot.lane.b32.xlu0 %v821, 32
    %v825 = vpop.permute.xlu0 %824
    %v827 = vmul.f32 %v821, %v825
    %829 = vrot.lane.b32.xlu0 %v827, 32
    %v830 = vpop.permute.xlu0 %829
    %v832 = vadd.f32 %v822, %v830
    %v833 = vtanh.pop %v832
    %835 = vrot.lane.b32.xlu0 %v833, 32
    %v836 = vpop.permute.xlu0 %835
    %v838 = vmul.f32 %v821, %v836
    %840 = vst [vmem:[#allocation1] ss:$4 sm:$0xff] %v817
    %v841 = vld.sshfl [vmem:[#allocation1] sm:$0xff pattern:$0x73625140]
    %842 = vrot.lane.b32.xlu0 %v841, 64
    %v843 = vpop.permute.xlu0 %842
    %846 = vrot.lane.b32.xlu0 %v838, 96
    %v847 = vpop.permute.xlu0 %846
    %v849 = vsel %vm158, %v843, %v847
    %v851 = vsel %vm160, %v849, 0
    %853 = vmatpush.msra.mxu0 0.0
    %854 = vmatpush.msra.mxu0 0.0
    %855 = vmatpush.msra.mxu0 0.0
    %856 = vmatpush.msra.mxu0 0.0
    %857 = vmatpush.msra.mxu0 0.0
    %858 = vmatpush.msra.mxu0 0.0
    %859 = vmatpush.msra.mxu0 0.0
    %860 = vmatpush.msra.mxu0 0.0
    %861 = vmatpush.msra.mxu0 %v130
    %862 = vmatpush.msra.mxu0 %v128
    %863 = vmatpush.msra.mxu0 %v126
    %864 = vmatpush.msra.mxu0 %v124
    %865 = vmatpush.msra.mxu0 %v122
    %866 = vmatpush.msra.mxu0 %v120
    %867 = vmatpush.msra.mxu0 %v118
    %868 = vmatpush.msra.mxu0 %v116
    %869 = vmatmul.f32.gmra.mxu0 %v851
    %v870 = vpop.f32.mrf.mxu0
    %v871 = vadd.f32 0.0, %v870
    %872 = vdwg.mxu0
    %v873 = vadd.f32 %v871, %v205
    %v874 = vmul.f32 %v873, %v60
    %v875 = vtanh.pop %v874
    %v876 = vmul.f32 %v875, %v60
    %v877 = vadd.f32 %v876, %v61
    %v878 = vmul.f32 %v877, %v832
    %880 = vrot.lane.b32.xlu0 %v877, 32
    %v881 = vpop.permute.xlu0 %880
    %v883 = vmul.f32 %v877, %v881
    %885 = vrot.lane.b32.xlu0 %v883, 32
    %v886 = vpop.permute.xlu0 %885
    %v888 = vadd.f32 %v878, %v886
    %v889 = vtanh.pop %v888
    %891 = vrot.lane.b32.xlu0 %v889, 32
    %v892 = vpop.permute.xlu0 %891
    %v894 = vmul.f32 %v877, %v892
    %v895 = vld [vmem:[%s5] sm:$0x1]
    %v897 = vperm.slane %v895, 0
    %898 = vrot.lane.b32.xlu0 %v897, 64
    %v899 = vpop.permute.xlu0 %898
    %v901 = vmul.f32 %v894, %v899
    %v902 = vld [vmem:[%s6] sm:$0x1]
    %v904 = vperm.slane %v902, 0
    %905 = vrot.lane.b32.xlu0 %v904, 64
    %v906 = vpop.permute.xlu0 %905
    %v908 = vadd.f32 %v901, %v906
    %v909 = vmax.f32 %v908, 0.0
    %v910 = vld [vmem:[%s7] sm:$0xff]
    %v911 = vld [vmem:[%s7 + $0x8] sm:$0xff]
    %v912 = vld [vmem:[%s7 + $0x10] sm:$0xff]
    %v913 = vld [vmem:[%s7 + $0x18] sm:$0xff]
    %v914 = vld [vmem:[%s8] sm:$0x1]
    %v916 = vperm.slane %v914, 0
    %919 = vrot.lane.b32.xlu0 %v909, 64
    %v920 = vpop.permute.xlu0 %919
    %v921 = vsel %vm158, %v920, 0
    %923 = vmatpush.msra.mxu0 0.0
    %924 = vmatpush.msra.mxu0 0.0
    %925 = vmatpush.msra.mxu0 0.0
    %926 = vmatpush.msra.mxu0 0.0
    %927 = vmatpush.msra.mxu0 0.0
    %928 = vmatpush.msra.mxu0 0.0
    %929 = vmatpush.msra.mxu0 0.0
    %930 = vmatpush.msra.mxu0 0.0
    %931 = vmatpush.msra.mxu0 0.0
    %932 = vmatpush.msra.mxu0 0.0
    %933 = vmatpush.msra.mxu0 0.0
    %934 = vmatpush.msra.mxu0 0.0
    %935 = vmatpush.msra.mxu0 %v913
    %936 = vmatpush.msra.mxu0 %v912
    %937 = vmatpush.msra.mxu0 %v911
    %938 = vmatpush.msra.mxu0 %v910
    %939 = vmatmul.f32.gmra.mxu0 %v921
    %v940 = vpop.f32.mrf.mxu0
    %v941 = vadd.f32 %v916, %v940
    %942 = vdwg.mxu0
    %v943 = vld [vmem:[%s9] sm:$0x1]
    %v945 = vperm.slane %v943, 0
    %v947 = vmul.f32 %v941, %v945
    %v948 = vld [vmem:[%s10] sm:$0x1]
    %v950 = vperm.slane %v948, 0
    %v952 = vadd.f32 %v947, %v950
    %v953 = vmax.f32 %v952, 0.0
    %v954 = vld [vmem:[%s11] sm:$0xff]
    %v955 = vld [vmem:[%s11 + $0x8] sm:$0xff]
    %v956 = vld [vmem:[%s11 + $0x10] sm:$0x1f]
    %v957 = vld [vmem:[%s12] sm:$0x1]
    %v959 = vperm.slane %v957, 0
    %vm961 = vcmask 171008
    %v963 = vsel %vm961, %v953, 0
    %vm965 = vcmask 1044480
    %v967 = vsel %vm965, %v956, 0
    %969 = vmatpush.msra.mxu0 0.0
    %970 = vmatpush.msra.mxu0 0.0
    %971 = vmatpush.msra.mxu0 0.0
    %972 = vmatpush.msra.mxu0 0.0
    %973 = vmatpush.msra.mxu0 0.0
    %974 = vmatpush.msra.mxu0 0.0
    %975 = vmatpush.msra.mxu0 0.0
    %976 = vmatpush.msra.mxu0 0.0
    %977 = vmatpush.msra.mxu0 0.0
    %978 = vmatpush.msra.mxu0 0.0
    %979 = vmatpush.msra.mxu0 0.0
    %980 = vmatpush.msra.mxu0 0.0
    %981 = vmatpush.msra.mxu0 0.0
    %982 = vmatpush.msra.mxu0 %v967
    %983 = vmatpush.msra.mxu0 %v955
    %984 = vmatpush.msra.mxu0 %v954
    %985 = vmatmul.f32.gmra.mxu0 %v963
    %v986 = vpop.f32.mrf.mxu0
    %v987 = vadd.f32 %v959, %v986
    %988 = vdwg.mxu0
    %v989 = vld [vmem:[%s13] sm:$0x1]
    %v991 = vperm.slane %v989, 0
    %v993 = vmul.f32 %v987, %v991
    %v994 = vld [vmem:[%s14] sm:$0x1]
    %v996 = vperm.slane %v994, 0
    %v998 = vadd.f32 %v993, %v996
    %v999 = vmax.f32 %v998, 0.0
    %v1000 = vld [vmem:[%s15] sm:$0xff]
    %v1001 = vld [vmem:[%s15 + $0x8] sm:$0x3]
    %v1002 = vld [vmem:[%s16] sm:$0x1]
    %v1004 = vperm.slane %v1002, 0
    %vm1006 = vcmask 80896
    %v1008 = vsel %vm1006, %v999, 0
    %vm1010 = vcmask 1041408
    %v1012 = vsel %vm1010, %v1001, 0
    %1014 = vmatpush.msra.mxu0 0.0
    %1015 = vmatpush.msra.mxu0 0.0
    %1016 = vmatpush.msra.mxu0 0.0
    %1017 = vmatpush.msra.mxu0 0.0
    %1018 = vmatpush.msra.mxu0 0.0
    %1019 = vmatpush.msra.mxu0 0.0
    %1020 = vmatpush.msra.mxu0 0.0
    %1021 = vmatpush.msra.mxu0 0.0
    %1022 = vmatpush.msra.mxu0 0.0
    %1023 = vmatpush.msra.mxu0 0.0
    %1024 = vmatpush.msra.mxu0 0.0
    %1025 = vmatpush.msra.mxu0 0.0
    %1026 = vmatpush.msra.mxu0 0.0
    %1027 = vmatpush.msra.mxu0 0.0
    %1028 = vmatpush.msra.mxu0 %v1012
    %1029 = vmatpush.msra.mxu0 %v1000
    %1030 = vmatmul.f32.gmra.mxu0 %v1008
    %v1031 = vpop.f32.mrf.mxu0
    %v1032 = vadd.f32 %v1004, %v1031
    %1033 = vdwg.mxu0
    %v1034 = vmul.f32 %v1032, 0.5
    %v1035 = vtanh.pop %v1034
    %v1036 = vadd.f32 %v1035, 1.0
    %v1037 = vmul.f32 %v1036, 0.5
    %vm1038 = vcmask 25600
    %1039 = vst.msk [vmem:[#allocation2] sm:$0x3] %vm1038, %v1037
    // Predicated region
    $region70: #{lstm_model_forward.1} parent=1 // pred_check
      _
    $region71: #{lstm_model_forward.1} parent=1 // pred_check_branch
      %1041 = sbr.rel (0) target = $region73
    $region72: #{lstm_model_forward.1} parent=1 // pred_region
      %1043 = vsyncadd [#allocation3], 0
      %s1045 = sshll.u32 [#allocation2], 4
      %s1046 = int_to_ptr.vmem [resolvable:$true] %s1045
      %s1047 = sshll.u32 %s17, 4
      %s1048 = int_to_ptr.hbm [resolvable:$true] %s1047
      %1050 = dma.vmem_to_hbm [thread:$0]  %s1046, 32, %s1048, [#allocation3]
    $region73: #{lstm_model_forward.1} parent=1 // pred_fallthru
      _
    // Predicated region
    $region74: #{lstm_model_forward.1} parent=1 // pred_check
      _
    $region75: #{lstm_model_forward.1} parent=1 // pred_check_branch
      %1052 = sbr.rel (0) target = $region77
    $region76: #{lstm_model_forward.1} parent=1 // pred_region
      %1054 = dma.done [#allocation3], 32
    $region77: #{lstm_model_forward.1} parent=1 // pred_fallthru
      _
    %1055 = vsyncpa [#allocation3], 1

</llo_original>
